<compile_context>
chip_gen: v5e
topology: v5e:2x2
jax: 0.10.0
libtpu: 0.0.40
codegen_flags: <defaults>
</compile_context>

<pallas_src>
import jax
import jax.numpy as jnp
from jax import lax
from jax.experimental import pallas as pl
from jax.experimental.pallas import tpu as pltpu

# ----------------------------- configuration -----------------------------
K = 3                 # conv kernel width
HIDDEN = 32           # embedding / hidden size
VOCAB = 32            # vocabulary size
LM = 128              # packed memory rows per batch == attention lane width
PAD_ID = K * VOCAB    # sentinel id >= K*V: matches no (tap, vocab) lane -> zero one-hot row


# --------------------------- fused forward kernel -------------------------
def _make_kernel(*, B, T, Lh, Ld):
    """Builds the fused kernel for static sizes B, T, Lh, Ld."""
    RD = B * T

    def kernel(enc_idx_ref, dec_idx_ref, enc_tab_ref, enc_b_ref,
               dec_tab_ref, dec_b_ref, wo_ref, bo_ref,
               dec_out_ref, attn_ref):
        # enc_idx_ref : (K, B*LM, 1) int32  shifted token ids in packed-memory layout
        # dec_idx_ref : (K, B*T, 1)  int32  causally shifted target token ids
        # enc_tab_ref : (K*V, H) bf16  fused embed-conv table (encoder), enc_b_ref (1,H) f32
        # dec_tab_ref : (K*V, H) bf16  fused embed-conv table (decoder), dec_b_ref (1,H) f32
        # wo_ref      : (H, H) bf16, bo_ref (1,H) f32   output projection
        # dec_out_ref : (B*T, H) f32
        # attn_ref    : (B, T, 128) f32  lanes [0:Lh]=attn(his), [Lh:Lh+Ld]=attn(n_doc)
        RM = enc_idx_ref.shape[1]          # B * LM
        KV = enc_tab_ref.shape[0]          # K * VOCAB

        def fused_onehot(idx_ref, R):
            # Shifted (tap, vocab) one-hot: lane j*V + v is 1 iff idx[j, r] == v.
            # PAD_ID (>= K*V) matches nothing -> all-zero row (conv padding for free).
            iota = lax.broadcasted_iota(jnp.int32, (R, KV), 1)
            match = None
            for j in range(K):                                  # static tap unroll
                hit = iota == (idx_ref[j] + j * VOCAB)          # (R,1) bcast vs (R,KV)
                match = hit if match is None else jnp.logical_or(match, hit)
            return jnp.where(match, 1.0, 0.0).astype(jnp.bfloat16)

        # ---- encoder: his & n_doc, both batches, ONE matmul -> packed memory ----
        memcat = jnp.tanh(
            jnp.dot(fused_onehot(enc_idx_ref, RM), enc_tab_ref[...],
                    preferred_element_type=jnp.float32) + enc_b_ref[...])   # (RM, H) f32
        memcat_bf = memcat.astype(jnp.bfloat16)

        # ---- decoder causal conv, both batches, ONE matmul ----
        hidden = jnp.tanh(
            jnp.dot(fused_onehot(dec_idx_ref, RD), dec_tab_ref[...],
                    preferred_element_type=jnp.float32) + dec_b_ref[...])   # (RD, H) f32

        # ---- fused dual attention over the packed memory, all batches at once ----
        # contracting dims ((1,),(1,)): no explicit transpose of the (RM, H) memory
        scores = lax.dot_general(hidden.astype(jnp.bfloat16), memcat_bf,
                                 (((1,), (1,)), ((), ())),
                                 preferred_element_type=jnp.float32)        # (RD, RM)

        row = lax.broadcasted_iota(jnp.int32, (RD, RM), 0)
        lane = lax.broadcasted_iota(jnp.int32, (RD, RM), 1)
        rb = jnp.zeros((RD, RM), jnp.int32)                  # row's batch, no int division
        for b in range(1, B):
            rb = rb + (row >= b * T).astype(jnp.int32)
        ll = lane - rb * LM                                  # lane offset in own batch block
        in_his = jnp.logical_and(ll >= 0, ll < Lh)
        in_doc = jnp.logical_and(ll >= Lh, ll < Lh + Ld)
        NEG = jnp.float32(-1e30)

        m_his = jnp.where(in_his, scores, NEG).max(axis=-1, keepdims=True)
        m_doc = jnp.where(in_doc, scores, NEG).max(axis=-1, keepdims=True)
        p = jnp.exp(jnp.where(in_his, scores - m_his,
                              jnp.where(in_doc, scores - m_doc, NEG)))      # masked lanes -> 0
        den_his = jnp.where(in_his, p, 0.0).sum(axis=-1, keepdims=True)
        den_doc = jnp.where(in_doc, p, 0.0).sum(axis=-1, keepdims=True)
        inv = jnp.where(in_his, pl.reciprocal(den_his, approx=True),
                        pl.reciprocal(den_doc, approx=True))
        p = p * inv                                                         # (RD, RM) f32

        ctx = jnp.dot(p.astype(jnp.bfloat16), memcat_bf,
                      preferred_element_type=jnp.float32)                   # (RD, H)

        out = jnp.tanh(jnp.dot((hidden + ctx).astype(jnp.bfloat16), wo_ref[...],
                               preferred_element_type=jnp.float32) + bo_ref[...])

        dec_out_ref[...] = out.astype(dec_out_ref.dtype)                    # (RD, H)
        for b in range(B):                                                  # (8,128)-tile-aligned
            attn_ref[b] = p[b * T:(b + 1) * T, b * LM:(b + 1) * LM].astype(attn_ref.dtype)

    return kernel


def _full_spec(shape):
    zeros = (0,) * len(shape)
    return pl.BlockSpec(shape, lambda i, _z=zeros: _z)


def ktransformer_fused(enc_idx, dec_idx, enc_tab, enc_b, dec_tab, dec_b, wo, bo,
                       *, B, T, Lh, Ld):
    RD = B * T
    H = enc_tab.shape[1]
    operands = (enc_idx, dec_idx, enc_tab, enc_b, dec_tab, dec_b, wo, bo)
    kernel = _make_kernel(B=B, T=T, Lh=Lh, Ld=Ld)
    return pl.pallas_call(
        kernel,
        out_shape=(jax.ShapeDtypeStruct((RD, H), jnp.float32),
                   jax.ShapeDtypeStruct((B, T, LM), jnp.float32)),
        grid=(1,),                                        # one launch, one grid step
        in_specs=[_full_spec(x.shape) for x in operands],
        out_specs=(_full_spec((RD, H)), _full_spec((B, T, LM))),
        compiler_params=pltpu.CompilerParams(
            dimension_semantics=("arbitrary",)),
    )(*operands)


# --------------------------- model wrapper ---------------------------------
class KTransformerModelPallas:
    """Mirrors KTransformerModel.forward(his, doc, tgt)."""

    def __init__(self, key):
        ks = jax.random.split(key, 6)
        scale = 0.1
        self.embedding = scale * jax.random.normal(ks[0], (VOCAB, HIDDEN), jnp.float32)
        # encoder (shared between his and doc[600:], as in the PyTorch module)
        self.enc_w = scale * jax.random.normal(ks[1], (K, HIDDEN, HIDDEN), jnp.float32)
        self.enc_b = scale * jax.random.normal(ks[2], (1, HIDDEN), jnp.float32)
        # decoder
        self.dec_w = scale * jax.random.normal(ks[3], (K, HIDDEN, HIDDEN), jnp.float32)
        self.dec_b = scale * jax.random.normal(ks[4], (1, HIDDEN), jnp.float32)
        self.wo = scale * jax.random.normal(ks[5], (HIDDEN, HIDDEN), jnp.float32)
        self.bo = jnp.zeros((1, HIDDEN), jnp.float32)

        # Precomputed fused embed-conv tables (review opt #1): tap-j block = emb @ w[j].
        self.enc_tab = jnp.concatenate(
            [self.embedding @ self.enc_w[j] for j in range(K)], axis=0).astype(jnp.bfloat16)
        self.dec_tab = jnp.concatenate(
            [self.embedding @ self.dec_w[j] for j in range(K)], axis=0).astype(jnp.bfloat16)
        self.wo_bf = self.wo.astype(jnp.bfloat16)

    @staticmethod
    def _shifted_ids(tok_bl, pad_left, pad_right):
        # (B, L) int32 -> (B, L, K) with [b, t, j] = padded[b, t + j]
        L = tok_bl.shape[1]
        p = jnp.pad(tok_bl, ((0, 0), (pad_left, pad_right)), constant_values=PAD_ID)
        return jnp.stack([p[:, j:j + L] for j in range(K)], axis=-1)

    def __call__(self, his, doc, tgt):
        tgt = tgt[:-1]                       # exclude last target step
        n_doc_tok = doc[600:, :, :]          # knowledge slice fed to the encoder
        # TODO(synk): decoder.init_state(his[100:], doc[600:], None, None) carries no
        # recurrent state for this decoder; it is a no-op here.
        Lh, B = his.shape[0], his.shape[1]
        Ld = n_doc_tok.shape[0]
        T = tgt.shape[0]
        assert Lh + Ld <= LM, "packed memory must fit in the 128-lane attention slab"

        his_ids = jnp.transpose(his[:, :, 0], (1, 0))        # (B, Lh)
        doc_ids = jnp.transpose(n_doc_tok[:, :, 0], (1, 0))  # (B, Ld)
        tgt_ids = jnp.transpose(tgt[:, :, 0], (1, 0))        # (B, T)

        P = (K - 1) // 2
        his_sh = self._shifted_ids(his_ids, P, K - 1 - P)    # 'same' conv padding
        doc_sh = self._shifted_ids(doc_ids, P, K - 1 - P)
        tgt_sh = self._shifted_ids(tgt_ids, K - 1, 0)        # causal padding

        # Pack shifted ids into the memory layout the kernel's encoder matmul writes:
        # rows [b*LM : b*LM+Lh] = his_b, [.. : ..+Ld] = doc_b, tail rows padded.
        fill = jnp.full((B, LM - Lh - Ld, K), PAD_ID, his_sh.dtype)
        enc_rows = jnp.concatenate([his_sh, doc_sh, fill], axis=1)                  # (B, LM, K)
        enc_idx = jnp.transpose(enc_rows.reshape(B * LM, K), (1, 0))[:, :, None]    # (K, B*LM, 1)
        dec_idx = jnp.transpose(tgt_sh.reshape(B * T, K), (1, 0))[:, :, None]       # (K, B*T, 1)

        dec_out_flat, attn_packed = ktransformer_fused(
            enc_idx, dec_idx, self.enc_tab, self.enc_b, self.dec_tab, self.dec_b,
            self.wo_bf, self.bo, B=B, T=T, Lh=Lh, Ld=Ld)

        dec_out = jnp.transpose(dec_out_flat.reshape(B, T, HIDDEN), (1, 0, 2))      # (T, B, H)
        attns = {
            "std": jnp.transpose(attn_packed[:, :, :Lh], (1, 0, 2)),        # over his_word
            "knl": jnp.transpose(attn_packed[:, :, Lh:Lh + Ld], (1, 0, 2)),  # over n_doc
        }
        return dec_out, attns


# --------------------------------- main -------------------------------------
if __name__ == "__main__":
    key = jax.random.PRNGKey(0)
    k_model, k_his, k_doc, k_tgt = jax.random.split(key, 4)

    B = 2
    HIS_LEN = 104      # > 100 so his[100:] in the spec's init_state is non-empty
    DOC_LEN = 616      # doc[600:] -> 16 knowledge positions, as in forward()
    TGT_LEN = 9        # tgt[:-1]  -> 8 decoding steps

    model = KTransformerModelPallas(k_model)

    his = jax.random.randint(k_his, (HIS_LEN, B, 1), 0, VOCAB, dtype=jnp.int32)
    doc = jax.random.randint(k_doc, (DOC_LEN, B, 1), 0, VOCAB, dtype=jnp.int32)
    tgt = jax.random.randint(k_tgt, (TGT_LEN, B, 1), 0, VOCAB, dtype=jnp.int32)

    fwd = jax.jit(model.__call__)
    dec_out, attns = fwd(his, doc, tgt)
    jax.block_until_ready(dec_out)
    jax.block_until_ready(attns["std"])
    jax.block_until_ready(attns["knl"])

    T = TGT_LEN - 1
    KNL = DOC_LEN - 600
    assert dec_out.shape == (T, B, HIDDEN)
    assert attns["std"].shape == (T, B, HIS_LEN)
    assert attns["knl"].shape == (T, B, KNL)
    assert bool(jnp.all(jnp.isfinite(dec_out)))
    assert bool(jnp.all(jnp.abs(attns["std"].sum(-1) - 1.0) < 0.05))
    assert bool(jnp.all(jnp.abs(attns["knl"].sum(-1) - 1.0) < 0.05))

    print("KERNEL_OK")
</pallas_src>

<mosaic_0001>
module attributes {stable_mosaic.version = 11 : i64} {
  func.func @kernel(%arg0: i32, %arg1: memref<3x256x1xi32, #tpu.memory_space<vmem>>, %arg2: memref<3x16x1xi32, #tpu.memory_space<vmem>>, %arg3: memref<96x32xbf16, #tpu.memory_space<vmem>>, %arg4: memref<1x32xf32, #tpu.memory_space<vmem>>, %arg5: memref<96x32xbf16, #tpu.memory_space<vmem>>, %arg6: memref<1x32xf32, #tpu.memory_space<vmem>>, %arg7: memref<32x32xbf16, #tpu.memory_space<vmem>>, %arg8: memref<1x32xf32, #tpu.memory_space<vmem>>, %arg9: memref<16x32xf32, #tpu.memory_space<vmem>>, %arg10: memref<2x8x128xf32, #tpu.memory_space<vmem>>) attributes {dimension_semantics = [#tpu.dimension_semantics<arbitrary>], iteration_bounds = array<i64: 1>, scalar_prefetch = 0 : i64, scratch_operands = 0 : i64, tpu.core_type = #tpu.core_type<tc>, window_params = [{pipeline_mode = #tpu.pipeline_mode<synchronous>, transform_indices = @transform_0, window_bounds = array<i64: 3, 256, 1>}, {pipeline_mode = #tpu.pipeline_mode<synchronous>, transform_indices = @transform_1, window_bounds = array<i64: 3, 16, 1>}, {pipeline_mode = #tpu.pipeline_mode<synchronous>, transform_indices = @transform_2, window_bounds = array<i64: 96, 32>}, {pipeline_mode = #tpu.pipeline_mode<synchronous>, transform_indices = @transform_3, window_bounds = array<i64: 1, 32>}, {pipeline_mode = #tpu.pipeline_mode<synchronous>, transform_indices = @transform_4, window_bounds = array<i64: 96, 32>}, {pipeline_mode = #tpu.pipeline_mode<synchronous>, transform_indices = @transform_5, window_bounds = array<i64: 1, 32>}, {pipeline_mode = #tpu.pipeline_mode<synchronous>, transform_indices = @transform_6, window_bounds = array<i64: 32, 32>}, {pipeline_mode = #tpu.pipeline_mode<synchronous>, transform_indices = @transform_7, window_bounds = array<i64: 1, 32>}, {pipeline_mode = #tpu.pipeline_mode<synchronous>, transform_indices = @transform_8, window_bounds = array<i64: 16, 32>}, {pipeline_mode = #tpu.pipeline_mode<synchronous>, transform_indices = @transform_9, window_bounds = array<i64: 2, 8, 128>}]} {
    %0 = tpu.iota {dimensions = array<i32: 1>} : vector<256x96xi32>
    %c0 = arith.constant 0 : index
    %c0_0 = arith.constant 0 : index
    %c0_1 = arith.constant 0 : index
    %1 = vector.load %arg1[%c0, %c0_0, %c0_1] : memref<3x256x1xi32, #tpu.memory_space<vmem>>, vector<1x256x1xi32>
    %2 = vector.shape_cast %1 : vector<1x256x1xi32> to vector<256x1xi32>
    %c0_i32 = arith.constant 0 : i32
    %3 = vector.broadcast %c0_i32 : i32 to vector<256x1xi32>
    %4 = arith.addi %2, %3 : vector<256x1xi32>
    %5 = vector.broadcast %4 : vector<256x1xi32> to vector<256x96xi32>
    %6 = arith.cmpi eq, %0, %5 : vector<256x96xi32>
    %c1 = arith.constant 1 : index
    %c0_2 = arith.constant 0 : index
    %c0_3 = arith.constant 0 : index
    %7 = vector.load %arg1[%c1, %c0_2, %c0_3] : memref<3x256x1xi32, #tpu.memory_space<vmem>>, vector<1x256x1xi32>
    %8 = vector.shape_cast %7 : vector<1x256x1xi32> to vector<256x1xi32>
    %c32_i32 = arith.constant 32 : i32
    %9 = vector.broadcast %c32_i32 : i32 to vector<256x1xi32>
    %10 = arith.addi %8, %9 : vector<256x1xi32>
    %11 = vector.broadcast %10 : vector<256x1xi32> to vector<256x96xi32>
    %12 = arith.cmpi eq, %0, %11 : vector<256x96xi32>
    %13 = arith.ori %6, %12 : vector<256x96xi1>
    %c2 = arith.constant 2 : index
    %c0_4 = arith.constant 0 : index
    %c0_5 = arith.constant 0 : index
    %14 = vector.load %arg1[%c2, %c0_4, %c0_5] : memref<3x256x1xi32, #tpu.memory_space<vmem>>, vector<1x256x1xi32>
    %15 = vector.shape_cast %14 : vector<1x256x1xi32> to vector<256x1xi32>
    %c64_i32 = arith.constant 64 : i32
    %16 = vector.broadcast %c64_i32 : i32 to vector<256x1xi32>
    %17 = arith.addi %15, %16 : vector<256x1xi32>
    %18 = vector.broadcast %17 : vector<256x1xi32> to vector<256x96xi32>
    %19 = arith.cmpi eq, %0, %18 : vector<256x96xi32>
    %20 = arith.ori %13, %19 : vector<256x96xi1>
    %cst = arith.constant 1.000000e+00 : f32
    %cst_6 = arith.constant 0.000000e+00 : f32
    %21 = vector.broadcast %cst : f32 to vector<256x96xf32>
    %22 = vector.broadcast %cst_6 : f32 to vector<256x96xf32>
    %23 = arith.select %20, %21, %22 : vector<256x96xi1>, vector<256x96xf32>
    %24 = arith.truncf %23 : vector<256x96xf32> to vector<256x96xbf16>
    %c0_7 = arith.constant 0 : index
    %c0_8 = arith.constant 0 : index
    %25 = vector.load %arg3[%c0_7, %c0_8] : memref<96x32xbf16, #tpu.memory_space<vmem>>, vector<96x32xbf16>
    %cst_9 = arith.constant dense<0.000000e+00> : vector<256x32xf32>
    %26 = tpu.matmul %24, %25, %cst_9 {dimension_numbers = #tpu.dot_dimension_numbers<[1], [0], [0], [1], [0, 0, 1, 1], [], []>} : vector<256x96xbf16>, vector<96x32xbf16>, vector<256x32xf32> -> vector<256x32xf32>
    %c0_10 = arith.constant 0 : index
    %c0_11 = arith.constant 0 : index
    %27 = vector.load %arg4[%c0_10, %c0_11] : memref<1x32xf32, #tpu.memory_space<vmem>>, vector<1x32xf32>
    %28 = vector.broadcast %27 : vector<1x32xf32> to vector<256x32xf32>
    %29 = arith.addf %26, %28 : vector<256x32xf32>
    %30 = math.tanh %29 : vector<256x32xf32>
    %31 = arith.truncf %30 : vector<256x32xf32> to vector<256x32xbf16>
    %32 = tpu.iota {dimensions = array<i32: 1>} : vector<16x96xi32>
    %c0_12 = arith.constant 0 : index
    %c0_13 = arith.constant 0 : index
    %c0_14 = arith.constant 0 : index
    %33 = vector.load %arg2[%c0_12, %c0_13, %c0_14] : memref<3x16x1xi32, #tpu.memory_space<vmem>>, vector<1x16x1xi32>
    %34 = vector.shape_cast %33 : vector<1x16x1xi32> to vector<16x1xi32>
    %c0_i32_15 = arith.constant 0 : i32
    %35 = vector.broadcast %c0_i32_15 : i32 to vector<16x1xi32>
    %36 = arith.addi %34, %35 : vector<16x1xi32>
    %37 = vector.broadcast %36 : vector<16x1xi32> to vector<16x96xi32>
    %38 = arith.cmpi eq, %32, %37 : vector<16x96xi32>
    %c1_16 = arith.constant 1 : index
    %c0_17 = arith.constant 0 : index
    %c0_18 = arith.constant 0 : index
    %39 = vector.load %arg2[%c1_16, %c0_17, %c0_18] : memref<3x16x1xi32, #tpu.memory_space<vmem>>, vector<1x16x1xi32>
    %40 = vector.shape_cast %39 : vector<1x16x1xi32> to vector<16x1xi32>
    %c32_i32_19 = arith.constant 32 : i32
    %41 = vector.broadcast %c32_i32_19 : i32 to vector<16x1xi32>
    %42 = arith.addi %40, %41 : vector<16x1xi32>
    %43 = vector.broadcast %42 : vector<16x1xi32> to vector<16x96xi32>
    %44 = arith.cmpi eq, %32, %43 : vector<16x96xi32>
    %45 = arith.ori %38, %44 : vector<16x96xi1>
    %c2_20 = arith.constant 2 : index
    %c0_21 = arith.constant 0 : index
    %c0_22 = arith.constant 0 : index
    %46 = vector.load %arg2[%c2_20, %c0_21, %c0_22] : memref<3x16x1xi32, #tpu.memory_space<vmem>>, vector<1x16x1xi32>
    %47 = vector.shape_cast %46 : vector<1x16x1xi32> to vector<16x1xi32>
    %c64_i32_23 = arith.constant 64 : i32
    %48 = vector.broadcast %c64_i32_23 : i32 to vector<16x1xi32>
    %49 = arith.addi %47, %48 : vector<16x1xi32>
    %50 = vector.broadcast %49 : vector<16x1xi32> to vector<16x96xi32>
    %51 = arith.cmpi eq, %32, %50 : vector<16x96xi32>
    %52 = arith.ori %45, %51 : vector<16x96xi1>
    %cst_24 = arith.constant 1.000000e+00 : f32
    %cst_25 = arith.constant 0.000000e+00 : f32
    %53 = vector.broadcast %cst_24 : f32 to vector<16x96xf32>
    %54 = vector.broadcast %cst_25 : f32 to vector<16x96xf32>
    %55 = arith.select %52, %53, %54 : vector<16x96xi1>, vector<16x96xf32>
    %56 = arith.truncf %55 : vector<16x96xf32> to vector<16x96xbf16>
    %c0_26 = arith.constant 0 : index
    %c0_27 = arith.constant 0 : index
    %57 = vector.load %arg5[%c0_26, %c0_27] : memref<96x32xbf16, #tpu.memory_space<vmem>>, vector<96x32xbf16>
    %cst_28 = arith.constant dense<0.000000e+00> : vector<16x32xf32>
    %58 = tpu.matmul %56, %57, %cst_28 {dimension_numbers = #tpu.dot_dimension_numbers<[1], [0], [0], [1], [0, 0, 1, 1], [], []>} : vector<16x96xbf16>, vector<96x32xbf16>, vector<16x32xf32> -> vector<16x32xf32>
    %c0_29 = arith.constant 0 : index
    %c0_30 = arith.constant 0 : index
    %59 = vector.load %arg6[%c0_29, %c0_30] : memref<1x32xf32, #tpu.memory_space<vmem>>, vector<1x32xf32>
    %60 = vector.broadcast %59 : vector<1x32xf32> to vector<16x32xf32>
    %61 = arith.addf %58, %60 : vector<16x32xf32>
    %62 = math.tanh %61 : vector<16x32xf32>
    %63 = arith.truncf %62 : vector<16x32xf32> to vector<16x32xbf16>
    %cst_31 = arith.constant dense<0.000000e+00> : vector<16x256xf32>
    %64 = tpu.matmul %63, %31, %cst_31 {dimension_numbers = #tpu.dot_dimension_numbers<[1], [1], [0], [0], [0, 0, 1, 0], [], []>} : vector<16x32xbf16>, vector<256x32xbf16>, vector<16x256xf32> -> vector<16x256xf32>
    %65 = tpu.iota {dimensions = array<i32: 0>} : vector<16x256xi32>
    %66 = tpu.iota {dimensions = array<i32: 1>} : vector<16x256xi32>
    %c0_i32_32 = arith.constant 0 : i32
    %67 = vector.broadcast %c0_i32_32 : i32 to vector<16x256xi32>
    %c8_i32 = arith.constant 8 : i32
    %68 = vector.broadcast %c8_i32 : i32 to vector<16x256xi32>
    %69 = arith.cmpi sge, %65, %68 : vector<16x256xi32>
    %70 = arith.extui %69 : vector<16x256xi1> to vector<16x256xi32>
    %71 = arith.addi %67, %70 : vector<16x256xi32>
    %c128_i32 = arith.constant 128 : i32
    %72 = vector.broadcast %c128_i32 : i32 to vector<16x256xi32>
    %73 = arith.muli %71, %72 : vector<16x256xi32>
    %74 = arith.subi %66, %73 : vector<16x256xi32>
    %c0_i32_33 = arith.constant 0 : i32
    %75 = vector.broadcast %c0_i32_33 : i32 to vector<16x256xi32>
    %76 = arith.cmpi sge, %74, %75 : vector<16x256xi32>
    %c104_i32 = arith.constant 104 : i32
    %77 = vector.broadcast %c104_i32 : i32 to vector<16x256xi32>
    %78 = arith.cmpi slt, %74, %77 : vector<16x256xi32>
    %79 = arith.andi %76, %78 : vector<16x256xi1>
    %c104_i32_34 = arith.constant 104 : i32
    %80 = vector.broadcast %c104_i32_34 : i32 to vector<16x256xi32>
    %81 = arith.cmpi sge, %74, %80 : vector<16x256xi32>
    %c120_i32 = arith.constant 120 : i32
    %82 = vector.broadcast %c120_i32 : i32 to vector<16x256xi32>
    %83 = arith.cmpi slt, %74, %82 : vector<16x256xi32>
    %84 = arith.andi %81, %83 : vector<16x256xi1>
    %cst_35 = arith.constant -1.000000e+30 : f32
    %85 = vector.broadcast %cst_35 : f32 to vector<16x256xf32>
    %86 = arith.select %79, %64, %85 : vector<16x256xi1>, vector<16x256xf32>
    %cst_36 = arith.constant dense<0xFF800000> : vector<16xf32>
    %87 = vector.multi_reduction <maximumf>, %86, %cst_36 [1] : vector<16x256xf32> to vector<16xf32>
    %88 = vector.shape_cast %87 : vector<16xf32> to vector<16x1xf32>
    %cst_37 = arith.constant -1.000000e+30 : f32
    %89 = vector.broadcast %cst_37 : f32 to vector<16x256xf32>
    %90 = arith.select %84, %64, %89 : vector<16x256xi1>, vector<16x256xf32>
    %cst_38 = arith.constant dense<0xFF800000> : vector<16xf32>
    %91 = vector.multi_reduction <maximumf>, %90, %cst_38 [1] : vector<16x256xf32> to vector<16xf32>
    %92 = vector.shape_cast %91 : vector<16xf32> to vector<16x1xf32>
    %93 = vector.broadcast %88 : vector<16x1xf32> to vector<16x256xf32>
    %94 = arith.subf %64, %93 : vector<16x256xf32>
    %95 = vector.broadcast %92 : vector<16x1xf32> to vector<16x256xf32>
    %96 = arith.subf %64, %95 : vector<16x256xf32>
    %cst_39 = arith.constant -1.000000e+30 : f32
    %97 = vector.broadcast %cst_39 : f32 to vector<16x256xf32>
    %98 = arith.select %84, %96, %97 : vector<16x256xi1>, vector<16x256xf32>
    %99 = arith.select %79, %94, %98 : vector<16x256xi1>, vector<16x256xf32>
    %100 = math.exp %99 : vector<16x256xf32>
    %cst_40 = arith.constant 0.000000e+00 : f32
    %101 = vector.broadcast %cst_40 : f32 to vector<16x256xf32>
    %102 = arith.select %79, %100, %101 : vector<16x256xi1>, vector<16x256xf32>
    %cst_41 = arith.constant dense<0.000000e+00> : vector<16xf32>
    %103 = vector.multi_reduction <add>, %102, %cst_41 [1] : vector<16x256xf32> to vector<16xf32>
    %104 = vector.shape_cast %103 : vector<16xf32> to vector<16x1xf32>
    %cst_42 = arith.constant 0.000000e+00 : f32
    %105 = vector.broadcast %cst_42 : f32 to vector<16x256xf32>
    %106 = arith.select %84, %100, %105 : vector<16x256xi1>, vector<16x256xf32>
    %cst_43 = arith.constant dense<0.000000e+00> : vector<16xf32>
    %107 = vector.multi_reduction <add>, %106, %cst_43 [1] : vector<16x256xf32> to vector<16xf32>
    %108 = vector.shape_cast %107 : vector<16xf32> to vector<16x1xf32>
    %109 = tpu.reciprocal %104 {approx = true} : vector<16x1xf32> -> vector<16x1xf32>
    %110 = tpu.reciprocal %108 {approx = true} : vector<16x1xf32> -> vector<16x1xf32>
    %111 = vector.shape_cast %109 : vector<16x1xf32> to vector<16x1xf32>
    %112 = vector.broadcast %111 : vector<16x1xf32> to vector<16x256xf32>
    %113 = vector.shape_cast %110 : vector<16x1xf32> to vector<16x1xf32>
    %114 = vector.broadcast %113 : vector<16x1xf32> to vector<16x256xf32>
    %115 = arith.select %79, %112, %114 : vector<16x256xi1>, vector<16x256xf32>
    %116 = arith.mulf %100, %115 : vector<16x256xf32>
    %117 = arith.truncf %116 : vector<16x256xf32> to vector<16x256xbf16>
    %cst_44 = arith.constant dense<0.000000e+00> : vector<16x32xf32>
    %118 = tpu.matmul %117, %31, %cst_44 {dimension_numbers = #tpu.dot_dimension_numbers<[1], [0], [0], [1], [0, 0, 1, 1], [], []>} : vector<16x256xbf16>, vector<256x32xbf16>, vector<16x32xf32> -> vector<16x32xf32>
    %119 = arith.addf %62, %118 : vector<16x32xf32>
    %120 = arith.truncf %119 : vector<16x32xf32> to vector<16x32xbf16>
    %c0_45 = arith.constant 0 : index
    %c0_46 = arith.constant 0 : index
    %121 = vector.load %arg7[%c0_45, %c0_46] : memref<32x32xbf16, #tpu.memory_space<vmem>>, vector<32x32xbf16>
    %cst_47 = arith.constant dense<0.000000e+00> : vector<16x32xf32>
    %122 = tpu.matmul %120, %121, %cst_47 {dimension_numbers = #tpu.dot_dimension_numbers<[1], [0], [0], [1], [0, 0, 1, 1], [], []>} : vector<16x32xbf16>, vector<32x32xbf16>, vector<16x32xf32> -> vector<16x32xf32>
    %c0_48 = arith.constant 0 : index
    %c0_49 = arith.constant 0 : index
    %123 = vector.load %arg8[%c0_48, %c0_49] : memref<1x32xf32, #tpu.memory_space<vmem>>, vector<1x32xf32>
    %124 = vector.broadcast %123 : vector<1x32xf32> to vector<16x32xf32>
    %125 = arith.addf %122, %124 : vector<16x32xf32>
    %126 = math.tanh %125 : vector<16x32xf32>
    %c0_50 = arith.constant 0 : index
    %c0_51 = arith.constant 0 : index
    %127 = vector.load %arg9[%c0_50, %c0_51] : memref<16x32xf32, #tpu.memory_space<vmem>>, vector<16x32xf32>
    tpu.vector_store %arg9[%c0_50, %c0_51], %126 {strides = array<i32>} : memref<16x32xf32, #tpu.memory_space<vmem>>, vector<16x32xf32>,
    %128 = vector.extract_strided_slice %116 {offsets = [0, 0], sizes = [8, 128], strides = [1, 1]} : vector<16x256xf32> to vector<8x128xf32>
    %c0_52 = arith.constant 0 : index
    %c0_53 = arith.constant 0 : index
    %c0_54 = arith.constant 0 : index
    %129 = vector.load %arg10[%c0_52, %c0_53, %c0_54] : memref<2x8x128xf32, #tpu.memory_space<vmem>>, vector<1x8x128xf32>
    %130 = vector.shape_cast %129 : vector<1x8x128xf32> to vector<8x128xf32>
    %131 = vector.shape_cast %128 : vector<8x128xf32> to vector<1x8x128xf32>
    tpu.vector_store %arg10[%c0_52, %c0_53, %c0_54], %131 {strides = array<i32>} : memref<2x8x128xf32, #tpu.memory_space<vmem>>, vector<1x8x128xf32>,
    %132 = vector.extract_strided_slice %116 {offsets = [8, 128], sizes = [8, 128], strides = [1, 1]} : vector<16x256xf32> to vector<8x128xf32>
    %c1_55 = arith.constant 1 : index
    %c0_56 = arith.constant 0 : index
    %c0_57 = arith.constant 0 : index
    %133 = vector.load %arg10[%c1_55, %c0_56, %c0_57] : memref<2x8x128xf32, #tpu.memory_space<vmem>>, vector<1x8x128xf32>
    %134 = vector.shape_cast %133 : vector<1x8x128xf32> to vector<8x128xf32>
    %135 = vector.shape_cast %132 : vector<8x128xf32> to vector<1x8x128xf32>
    tpu.vector_store %arg10[%c1_55, %c0_56, %c0_57], %135 {strides = array<i32>} : memref<2x8x128xf32, #tpu.memory_space<vmem>>, vector<1x8x128xf32>,
    return
  }
  func.func @transform_0(%arg0: i32) -> (i32, i32, i32) {
    %c0_i32 = arith.constant 0 : i32
    %c0_i32_0 = arith.constant 0 : i32
    %c0_i32_1 = arith.constant 0 : i32
    %c0_i32_2 = arith.constant 0 : i32
    return %c0_i32, %c0_i32_0, %c0_i32_1 : i32, i32, i32
  }
  func.func @transform_1(%arg0: i32) -> (i32, i32, i32) {
    %c0_i32 = arith.constant 0 : i32
    %c0_i32_0 = arith.constant 0 : i32
    %c0_i32_1 = arith.constant 0 : i32
    %c0_i32_2 = arith.constant 0 : i32
    return %c0_i32, %c0_i32_0, %c0_i32_1 : i32, i32, i32
  }
  func.func @transform_2(%arg0: i32) -> (i32, i32) {
    %c0_i32 = arith.constant 0 : i32
    %c0_i32_0 = arith.constant 0 : i32
    %c0_i32_1 = arith.constant 0 : i32
    return %c0_i32, %c0_i32_0 : i32, i32
  }
  func.func @transform_3(%arg0: i32) -> (i32, i32) {
    %c0_i32 = arith.constant 0 : i32
    %c0_i32_0 = arith.constant 0 : i32
    %c0_i32_1 = arith.constant 0 : i32
    return %c0_i32, %c0_i32_0 : i32, i32
  }
  func.func @transform_4(%arg0: i32) -> (i32, i32) {
    %c0_i32 = arith.constant 0 : i32
    %c0_i32_0 = arith.constant 0 : i32
    %c0_i32_1 = arith.constant 0 : i32
    return %c0_i32, %c0_i32_0 : i32, i32
  }
  func.func @transform_5(%arg0: i32) -> (i32, i32) {
    %c0_i32 = arith.constant 0 : i32
    %c0_i32_0 = arith.constant 0 : i32
    %c0_i32_1 = arith.constant 0 : i32
    return %c0_i32, %c0_i32_0 : i32, i32
  }
  func.func @transform_6(%arg0: i32) -> (i32, i32) {
    %c0_i32 = arith.constant 0 : i32
    %c0_i32_0 = arith.constant 0 : i32
    %c0_i32_1 = arith.constant 0 : i32
    return %c0_i32, %c0_i32_0 : i32, i32
  }
  func.func @transform_7(%arg0: i32) -> (i32, i32) {
    %c0_i32 = arith.constant 0 : i32
    %c0_i32_0 = arith.constant 0 : i32
    %c0_i32_1 = arith.constant 0 : i32
    return %c0_i32, %c0_i32_0 : i32, i32
  }
  func.func @transform_8(%arg0: i32) -> (i32, i32) {
    %c0_i32 = arith.constant 0 : i32
    %c0_i32_0 = arith.constant 0 : i32
    %c0_i32_1 = arith.constant 0 : i32
    return %c0_i32, %c0_i32_0 : i32, i32
  }
  func.func @transform_9(%arg0: i32) -> (i32, i32, i32) {
    %c0_i32 = arith.constant 0 : i32
    %c0_i32_0 = arith.constant 0 : i32
    %c0_i32_1 = arith.constant 0 : i32
    %c0_i32_2 = arith.constant 0 : i32
    return %c0_i32, %c0_i32_0, %c0_i32_1 : i32, i32, i32
  }
}

</mosaic_0001>

<llo_original>
// kernel: a_call__.1
$region0: #{a_call__.1}
  #allocation0 [shape = 'u32[]', space=smem, size = 0x4, offset = 0x4, fixed_abs, tag = 'smem constant byte address 0x4 - core index']
  #allocation1 [shape = 'u32[72,128]{1,0:T(1,128)}', space=vmem, size = 0x9000, scoped, tag = 'internal scratch']
  %s0 = inlined_call_operand.vmem [shape: s32[3,256,1], index: 0, kind: input, shape index: {}]
  %s1 = inlined_call_operand.vmem [shape: s32[3,16,1], index: 1, kind: input, shape index: {}]
  %s2 = inlined_call_operand.vmem [shape: bf16[96,32], index: 2, kind: input, shape index: {}]
  %s3 = inlined_call_operand.vmem [shape: f32[1,32], index: 3, kind: input, shape index: {}]
  %s4 = inlined_call_operand.vmem [shape: bf16[96,32], index: 4, kind: input, shape index: {}]
  %s5 = inlined_call_operand.vmem [shape: f32[1,32], index: 5, kind: input, shape index: {}]
  %s6 = inlined_call_operand.vmem [shape: bf16[32,32], index: 6, kind: input, shape index: {}]
  %s7 = inlined_call_operand.vmem [shape: f32[1,32], index: 7, kind: input, shape index: {}]
  %s8 = inlined_call_operand.vmem [shape: f32[16,32], index: 8, kind: output, shape index: {0}]
  %s9 = inlined_call_operand.vmem [shape: f32[2,8,128], index: 9, kind: output, shape index: {1}]
  %10 = xla_tuple %s8, %s9
  %s11 = sld [smem:[#allocation0]]
  $region50: #{a_call__.1} parent=0
    _
  %s13 = ssub.s32 1, %s11
  %s14 = scalar_select 0, %s13, %s11
  // Predicated region
  $region2: #{a_call__.1} parent=0 // pred_check
    _
  $region3: #{a_call__.1} parent=0 // pred_check_branch
    %16 = sbr.rel (0) target = $region5
  $region4: #{a_call__.1} parent=0 // pred_region
    _
  $region5: #{a_call__.1} parent=0 // pred_fallthru
    _
  // Predicated region
  $region6: #{a_call__.1} parent=0 // pred_check
    _
  $region7: #{a_call__.1} parent=0 // pred_check_branch
    %18 = sbr.rel (0) target = $region9
  $region8: #{a_call__.1} parent=0 // pred_region
    _
  $region9: #{a_call__.1} parent=0 // pred_fallthru
    _
  // Predicated region
  $region10: #{a_call__.1} parent=0 // pred_check
    _
  $region11: #{a_call__.1} parent=0 // pred_check_branch
    %20 = sbr.rel (0) target = $region13
  $region12: #{a_call__.1} parent=0 // pred_region
    _
  $region13: #{a_call__.1} parent=0 // pred_fallthru
    _
  // Predicated region
  $region14: #{a_call__.1} parent=0 // pred_check
    _
  $region15: #{a_call__.1} parent=0 // pred_check_branch
    %22 = sbr.rel (0) target = $region17
  $region16: #{a_call__.1} parent=0 // pred_region
    _
  $region17: #{a_call__.1} parent=0 // pred_fallthru
    _
  // Predicated region
  $region18: #{a_call__.1} parent=0 // pred_check
    _
  $region19: #{a_call__.1} parent=0 // pred_check_branch
    %24 = sbr.rel (0) target = $region21
  $region20: #{a_call__.1} parent=0 // pred_region
    _
  $region21: #{a_call__.1} parent=0 // pred_fallthru
    _
  // Predicated region
  $region22: #{a_call__.1} parent=0 // pred_check
    _
  $region23: #{a_call__.1} parent=0 // pred_check_branch
    %26 = sbr.rel (0) target = $region25
  $region24: #{a_call__.1} parent=0 // pred_region
    _
  $region25: #{a_call__.1} parent=0 // pred_fallthru
    _
  // Predicated region
  $region26: #{a_call__.1} parent=0 // pred_check
    _
  $region27: #{a_call__.1} parent=0 // pred_check_branch
    %28 = sbr.rel (0) target = $region29
  $region28: #{a_call__.1} parent=0 // pred_region
    _
  $region29: #{a_call__.1} parent=0 // pred_fallthru
    _
  // Predicated region
  $region30: #{a_call__.1} parent=0 // pred_check
    _
  $region31: #{a_call__.1} parent=0 // pred_check_branch
    %30 = sbr.rel (0) target = $region33
  $region32: #{a_call__.1} parent=0 // pred_region
    _
  $region33: #{a_call__.1} parent=0 // pred_fallthru
    _
  %v32 = vlaneseq
  %v33 = vand.u32 %v32, 127
  %v34 = vld [vmem:[%s0] sm:$0xff]
  %v35 = vld [vmem:[%s0 + $0x8] sm:$0xff]
  %v36 = vld [vmem:[%s0 + $0x10] sm:$0xff]
  %v37 = vld [vmem:[%s0 + $0x18] sm:$0xff]
  %v38 = vld [vmem:[%s0 + $0x20] sm:$0xff]
  %v39 = vld [vmem:[%s0 + $0x28] sm:$0xff]
  %v40 = vld [vmem:[%s0 + $0x30] sm:$0xff]
  %v41 = vld [vmem:[%s0 + $0x38] sm:$0xff]
  %v42 = vld [vmem:[%s0 + $0x40] sm:$0xff]
  %v43 = vld [vmem:[%s0 + $0x48] sm:$0xff]
  %v44 = vld [vmem:[%s0 + $0x50] sm:$0xff]
  %v45 = vld [vmem:[%s0 + $0x58] sm:$0xff]
  %v46 = vld [vmem:[%s0 + $0x60] sm:$0xff]
  %v47 = vld [vmem:[%s0 + $0x68] sm:$0xff]
  %v48 = vld [vmem:[%s0 + $0x70] sm:$0xff]
  %v49 = vld [vmem:[%s0 + $0x78] sm:$0xff]
  %v50 = vld [vmem:[%s0 + $0x80] sm:$0xff]
  %v51 = vld [vmem:[%s0 + $0x88] sm:$0xff]
  %v52 = vld [vmem:[%s0 + $0x90] sm:$0xff]
  %v53 = vld [vmem:[%s0 + $0x98] sm:$0xff]
  %v54 = vld [vmem:[%s0 + $0xa0] sm:$0xff]
  %v55 = vld [vmem:[%s0 + $0xa8] sm:$0xff]
  %v56 = vld [vmem:[%s0 + $0xb0] sm:$0xff]
  %v57 = vld [vmem:[%s0 + $0xb8] sm:$0xff]
  %v58 = vld [vmem:[%s0 + $0xc0] sm:$0xff]
  %v59 = vld [vmem:[%s0 + $0xc8] sm:$0xff]
  %v60 = vld [vmem:[%s0 + $0xd0] sm:$0xff]
  %v61 = vld [vmem:[%s0 + $0xd8] sm:$0xff]
  %v62 = vld [vmem:[%s0 + $0xe0] sm:$0xff]
  %v63 = vld [vmem:[%s0 + $0xe8] sm:$0xff]
  %v64 = vld [vmem:[%s0 + $0xf0] sm:$0xff]
  %v65 = vld [vmem:[%s0 + $0xf8] sm:$0xff]
  %66 = vset.pattern.permute.xlu0 0
  %67 = vperm.xlu0 %66, %v34
  %v68 = vpop.permute.xlu0 %67
  %69 = vset.pattern.permute.xlu0 0
  %70 = vperm.xlu0 %69, %v35
  %v71 = vpop.permute.xlu0 %70
  %72 = vset.pattern.permute.xlu0 0
  %73 = vperm.xlu0 %72, %v36
  %v74 = vpop.permute.xlu0 %73
  %75 = vset.pattern.permute.xlu0 0
  %76 = vperm.xlu0 %75, %v37
  %v77 = vpop.permute.xlu0 %76
  %78 = vset.pattern.permute.xlu0 0
  %79 = vperm.xlu0 %78, %v38
  %v80 = vpop.permute.xlu0 %79
  %81 = vset.pattern.permute.xlu0 0
  %82 = vperm.xlu0 %81, %v39
  %v83 = vpop.permute.xlu0 %82
  %84 = vset.pattern.permute.xlu0 0
  %85 = vperm.xlu0 %84, %v40
  %v86 = vpop.permute.xlu0 %85
  %87 = vset.pattern.permute.xlu0 0
  %88 = vperm.xlu0 %87, %v41
  %v89 = vpop.permute.xlu0 %88
  %90 = vset.pattern.permute.xlu0 0
  %91 = vperm.xlu0 %90, %v42
  %v92 = vpop.permute.xlu0 %91
  %93 = vset.pattern.permute.xlu0 0
  %94 = vperm.xlu0 %93, %v43
  %v95 = vpop.permute.xlu0 %94
  %96 = vset.pattern.permute.xlu0 0
  %97 = vperm.xlu0 %96, %v44
  %v98 = vpop.permute.xlu0 %97
  %99 = vset.pattern.permute.xlu0 0
  %100 = vperm.xlu0 %99, %v45
  %v101 = vpop.permute.xlu0 %100
  %102 = vset.pattern.permute.xlu0 0
  %103 = vperm.xlu0 %102, %v46
  %v104 = vpop.permute.xlu0 %103
  %105 = vset.pattern.permute.xlu0 0
  %106 = vperm.xlu0 %105, %v47
  %v107 = vpop.permute.xlu0 %106
  %108 = vset.pattern.permute.xlu0 0
  %109 = vperm.xlu0 %108, %v48
  %v110 = vpop.permute.xlu0 %109
  %111 = vset.pattern.permute.xlu0 0
  %112 = vperm.xlu0 %111, %v49
  %v113 = vpop.permute.xlu0 %112
  %114 = vset.pattern.permute.xlu0 0
  %115 = vperm.xlu0 %114, %v50
  %v116 = vpop.permute.xlu0 %115
  %117 = vset.pattern.permute.xlu0 0
  %118 = vperm.xlu0 %117, %v51
  %v119 = vpop.permute.xlu0 %118
  %120 = vset.pattern.permute.xlu0 0
  %121 = vperm.xlu0 %120, %v52
  %v122 = vpop.permute.xlu0 %121
  %123 = vset.pattern.permute.xlu0 0
  %124 = vperm.xlu0 %123, %v53
  %v125 = vpop.permute.xlu0 %124
  %126 = vset.pattern.permute.xlu0 0
  %127 = vperm.xlu0 %126, %v54
  %v128 = vpop.permute.xlu0 %127
  %129 = vset.pattern.permute.xlu0 0
  %130 = vperm.xlu0 %129, %v55
  %v131 = vpop.permute.xlu0 %130
  %132 = vset.pattern.permute.xlu0 0
  %133 = vperm.xlu0 %132, %v56
  %v134 = vpop.permute.xlu0 %133
  %135 = vset.pattern.permute.xlu0 0
  %136 = vperm.xlu0 %135, %v57
  %v137 = vpop.permute.xlu0 %136
  %138 = vset.pattern.permute.xlu0 0
  %139 = vperm.xlu0 %138, %v58
  %v140 = vpop.permute.xlu0 %139
  %141 = vset.pattern.permute.xlu0 0
  %142 = vperm.xlu0 %141, %v59
  %v143 = vpop.permute.xlu0 %142
  %144 = vset.pattern.permute.xlu0 0
  %145 = vperm.xlu0 %144, %v60
  %v146 = vpop.permute.xlu0 %145
  %147 = vset.pattern.permute.xlu0 0
  %148 = vperm.xlu0 %147, %v61
  %v149 = vpop.permute.xlu0 %148
  %150 = vset.pattern.permute.xlu0 0
  %151 = vperm.xlu0 %150, %v62
  %v152 = vpop.permute.xlu0 %151
  %153 = vset.pattern.permute.xlu0 0
  %154 = vperm.xlu0 %153, %v63
  %v155 = vpop.permute.xlu0 %154
  %156 = vset.pattern.permute.xlu0 0
  %157 = vperm.xlu0 %156, %v64
  %v158 = vpop.permute.xlu0 %157
  %159 = vset.pattern.permute.xlu0 0
  %160 = vperm.xlu0 %159, %v65
  %v161 = vpop.permute.xlu0 %160
  %vm162 = vcmp.eq.s32.totalorder %v33, %v68
  %vm163 = vcmp.eq.s32.totalorder %v33, %v71
  %vm164 = vcmp.eq.s32.totalorder %v33, %v74
  %vm165 = vcmp.eq.s32.totalorder %v33, %v77
  %vm166 = vcmp.eq.s32.totalorder %v33, %v80
  %vm167 = vcmp.eq.s32.totalorder %v33, %v83
  %vm168 = vcmp.eq.s32.totalorder %v33, %v86
  %vm169 = vcmp.eq.s32.totalorder %v33, %v89
  %vm170 = vcmp.eq.s32.totalorder %v33, %v92
  %vm171 = vcmp.eq.s32.totalorder %v33, %v95
  %vm172 = vcmp.eq.s32.totalorder %v33, %v98
  %vm173 = vcmp.eq.s32.totalorder %v33, %v101
  %vm174 = vcmp.eq.s32.totalorder %v33, %v104
  %vm175 = vcmp.eq.s32.totalorder %v33, %v107
  %vm176 = vcmp.eq.s32.totalorder %v33, %v110
  %vm177 = vcmp.eq.s32.totalorder %v33, %v113
  %vm178 = vcmp.eq.s32.totalorder %v33, %v116
  %vm179 = vcmp.eq.s32.totalorder %v33, %v119
  %vm180 = vcmp.eq.s32.totalorder %v33, %v122
  %vm181 = vcmp.eq.s32.totalorder %v33, %v125
  %vm182 = vcmp.eq.s32.totalorder %v33, %v128
  %vm183 = vcmp.eq.s32.totalorder %v33, %v131
  %vm184 = vcmp.eq.s32.totalorder %v33, %v134
  %vm185 = vcmp.eq.s32.totalorder %v33, %v137
  %vm186 = vcmp.eq.s32.totalorder %v33, %v140
  %vm187 = vcmp.eq.s32.totalorder %v33, %v143
  %vm188 = vcmp.eq.s32.totalorder %v33, %v146
  %vm189 = vcmp.eq.s32.totalorder %v33, %v149
  %vm190 = vcmp.eq.s32.totalorder %v33, %v152
  %vm191 = vcmp.eq.s32.totalorder %v33, %v155
  %vm192 = vcmp.eq.s32.totalorder %v33, %v158
  %vm193 = vcmp.eq.s32.totalorder %v33, %v161
  %s194 = scalar_lea.vmem %s0, 256
  %v195 = vld [vmem:[%s194] sm:$0xff]
  %v196 = vld [vmem:[%s194 + $0x8] sm:$0xff]
  %v197 = vld [vmem:[%s194 + $0x10] sm:$0xff]
  %v198 = vld [vmem:[%s194 + $0x18] sm:$0xff]
  %v199 = vld [vmem:[%s194 + $0x20] sm:$0xff]
  %v200 = vld [vmem:[%s194 + $0x28] sm:$0xff]
  %v201 = vld [vmem:[%s194 + $0x30] sm:$0xff]
  %v202 = vld [vmem:[%s194 + $0x38] sm:$0xff]
  %v203 = vld [vmem:[%s194 + $0x40] sm:$0xff]
  %v204 = vld [vmem:[%s194 + $0x48] sm:$0xff]
  %v205 = vld [vmem:[%s194 + $0x50] sm:$0xff]
  %v206 = vld [vmem:[%s194 + $0x58] sm:$0xff]
  %v207 = vld [vmem:[%s194 + $0x60] sm:$0xff]
  %v208 = vld [vmem:[%s194 + $0x68] sm:$0xff]
  %v209 = vld [vmem:[%s194 + $0x70] sm:$0xff]
  %v210 = vld [vmem:[%s194 + $0x78] sm:$0xff]
  %v211 = vld [vmem:[%s194 + $0x80] sm:$0xff]
  %v212 = vld [vmem:[%s194 + $0x88] sm:$0xff]
  %v213 = vld [vmem:[%s194 + $0x90] sm:$0xff]
  %v214 = vld [vmem:[%s194 + $0x98] sm:$0xff]
  %v215 = vld [vmem:[%s194 + $0xa0] sm:$0xff]
  %v216 = vld [vmem:[%s194 + $0xa8] sm:$0xff]
  %v217 = vld [vmem:[%s194 + $0xb0] sm:$0xff]
  %v218 = vld [vmem:[%s194 + $0xb8] sm:$0xff]
  %v219 = vld [vmem:[%s194 + $0xc0] sm:$0xff]
  %v220 = vld [vmem:[%s194 + $0xc8] sm:$0xff]
  %v221 = vld [vmem:[%s194 + $0xd0] sm:$0xff]
  %v222 = vld [vmem:[%s194 + $0xd8] sm:$0xff]
  %v223 = vld [vmem:[%s194 + $0xe0] sm:$0xff]
  %v224 = vld [vmem:[%s194 + $0xe8] sm:$0xff]
  %v225 = vld [vmem:[%s194 + $0xf0] sm:$0xff]
  %v226 = vld [vmem:[%s194 + $0xf8] sm:$0xff]
  %v227 = vadd.s32 %v195, 32
  %v228 = vadd.s32 %v196, 32
  %v229 = vadd.s32 %v197, 32
  %v230 = vadd.s32 %v198, 32
  %v231 = vadd.s32 %v199, 32
  %v232 = vadd.s32 %v200, 32
  %v233 = vadd.s32 %v201, 32
  %v234 = vadd.s32 %v202, 32
  %v235 = vadd.s32 %v203, 32
  %v236 = vadd.s32 %v204, 32
  %v237 = vadd.s32 %v205, 32
  %v238 = vadd.s32 %v206, 32
  %v239 = vadd.s32 %v207, 32
  %v240 = vadd.s32 %v208, 32
  %v241 = vadd.s32 %v209, 32
  %v242 = vadd.s32 %v210, 32
  %v243 = vadd.s32 %v211, 32
  %v244 = vadd.s32 %v212, 32
  %v245 = vadd.s32 %v213, 32
  %v246 = vadd.s32 %v214, 32
  %v247 = vadd.s32 %v215, 32
  %v248 = vadd.s32 %v216, 32
  %v249 = vadd.s32 %v217, 32
  %v250 = vadd.s32 %v218, 32
  %v251 = vadd.s32 %v219, 32
  %v252 = vadd.s32 %v220, 32
  %v253 = vadd.s32 %v221, 32
  %v254 = vadd.s32 %v222, 32
  %v255 = vadd.s32 %v223, 32
  %v256 = vadd.s32 %v224, 32
  %v257 = vadd.s32 %v225, 32
  %v258 = vadd.s32 %v226, 32
  %259 = vset.pattern.permute.xlu0 0
  %260 = vperm.xlu0 %259, %v227
  %v261 = vpop.permute.xlu0 %260
  %262 = vset.pattern.permute.xlu0 0
  %263 = vperm.xlu0 %262, %v228
  %v264 = vpop.permute.xlu0 %263
  %265 = vset.pattern.permute.xlu0 0
  %266 = vperm.xlu0 %265, %v229
  %v267 = vpop.permute.xlu0 %266
  %268 = vset.pattern.permute.xlu0 0
  %269 = vperm.xlu0 %268, %v230
  %v270 = vpop.permute.xlu0 %269
  %271 = vset.pattern.permute.xlu0 0
  %272 = vperm.xlu0 %271, %v231
  %v273 = vpop.permute.xlu0 %272
  %274 = vset.pattern.permute.xlu0 0
  %275 = vperm.xlu0 %274, %v232
  %v276 = vpop.permute.xlu0 %275
  %277 = vset.pattern.permute.xlu0 0
  %278 = vperm.xlu0 %277, %v233
  %v279 = vpop.permute.xlu0 %278
  %280 = vset.pattern.permute.xlu0 0
  %281 = vperm.xlu0 %280, %v234
  %v282 = vpop.permute.xlu0 %281
  %283 = vset.pattern.permute.xlu0 0
  %284 = vperm.xlu0 %283, %v235
  %v285 = vpop.permute.xlu0 %284
  %286 = vset.pattern.permute.xlu0 0
  %287 = vperm.xlu0 %286, %v236
  %v288 = vpop.permute.xlu0 %287
  %289 = vset.pattern.permute.xlu0 0
  %290 = vperm.xlu0 %289, %v237
  %v291 = vpop.permute.xlu0 %290
  %292 = vset.pattern.permute.xlu0 0
  %293 = vperm.xlu0 %292, %v238
  %v294 = vpop.permute.xlu0 %293
  %295 = vset.pattern.permute.xlu0 0
  %296 = vperm.xlu0 %295, %v239
  %v297 = vpop.permute.xlu0 %296
  %298 = vset.pattern.permute.xlu0 0
  %299 = vperm.xlu0 %298, %v240
  %v300 = vpop.permute.xlu0 %299
  %301 = vset.pattern.permute.xlu0 0
  %302 = vperm.xlu0 %301, %v241
  %v303 = vpop.permute.xlu0 %302
  %304 = vset.pattern.permute.xlu0 0
  %305 = vperm.xlu0 %304, %v242
  %v306 = vpop.permute.xlu0 %305
  %307 = vset.pattern.permute.xlu0 0
  %308 = vperm.xlu0 %307, %v243
  %v309 = vpop.permute.xlu0 %308
  %310 = vset.pattern.permute.xlu0 0
  %311 = vperm.xlu0 %310, %v244
  %v312 = vpop.permute.xlu0 %311
  %313 = vset.pattern.permute.xlu0 0
  %314 = vperm.xlu0 %313, %v245
  %v315 = vpop.permute.xlu0 %314
  %316 = vset.pattern.permute.xlu0 0
  %317 = vperm.xlu0 %316, %v246
  %v318 = vpop.permute.xlu0 %317
  %319 = vset.pattern.permute.xlu0 0
  %320 = vperm.xlu0 %319, %v247
  %v321 = vpop.permute.xlu0 %320
  %322 = vset.pattern.permute.xlu0 0
  %323 = vperm.xlu0 %322, %v248
  %v324 = vpop.permute.xlu0 %323
  %325 = vset.pattern.permute.xlu0 0
  %326 = vperm.xlu0 %325, %v249
  %v327 = vpop.permute.xlu0 %326
  %328 = vset.pattern.permute.xlu0 0
  %329 = vperm.xlu0 %328, %v250
  %v330 = vpop.permute.xlu0 %329
  %331 = vset.pattern.permute.xlu0 0
  %332 = vperm.xlu0 %331, %v251
  %v333 = vpop.permute.xlu0 %332
  %334 = vset.pattern.permute.xlu0 0
  %335 = vperm.xlu0 %334, %v252
  %v336 = vpop.permute.xlu0 %335
  %337 = vset.pattern.permute.xlu0 0
  %338 = vperm.xlu0 %337, %v253
  %v339 = vpop.permute.xlu0 %338
  %340 = vset.pattern.permute.xlu0 0
  %341 = vperm.xlu0 %340, %v254
  %v342 = vpop.permute.xlu0 %341
  %343 = vset.pattern.permute.xlu0 0
  %344 = vperm.xlu0 %343, %v255
  %v345 = vpop.permute.xlu0 %344
  %346 = vset.pattern.permute.xlu0 0
  %347 = vperm.xlu0 %346, %v256
  %v348 = vpop.permute.xlu0 %347
  %349 = vset.pattern.permute.xlu0 0
  %350 = vperm.xlu0 %349, %v257
  %v351 = vpop.permute.xlu0 %350
  %352 = vset.pattern.permute.xlu0 0
  %353 = vperm.xlu0 %352, %v258
  %v354 = vpop.permute.xlu0 %353
  %vm355 = vcmp.eq.s32.totalorder %v33, %v261
  %vm356 = vcmp.eq.s32.totalorder %v33, %v264
  %vm357 = vcmp.eq.s32.totalorder %v33, %v267
  %vm358 = vcmp.eq.s32.totalorder %v33, %v270
  %vm359 = vcmp.eq.s32.totalorder %v33, %v273
  %vm360 = vcmp.eq.s32.totalorder %v33, %v276
  %vm361 = vcmp.eq.s32.totalorder %v33, %v279
  %vm362 = vcmp.eq.s32.totalorder %v33, %v282
  %vm363 = vcmp.eq.s32.totalorder %v33, %v285
  %vm364 = vcmp.eq.s32.totalorder %v33, %v288
  %vm365 = vcmp.eq.s32.totalorder %v33, %v291
  %vm366 = vcmp.eq.s32.totalorder %v33, %v294
  %vm367 = vcmp.eq.s32.totalorder %v33, %v297
  %vm368 = vcmp.eq.s32.totalorder %v33, %v300
  %vm369 = vcmp.eq.s32.totalorder %v33, %v303
  %vm370 = vcmp.eq.s32.totalorder %v33, %v306
  %vm371 = vcmp.eq.s32.totalorder %v33, %v309
  %vm372 = vcmp.eq.s32.totalorder %v33, %v312
  %vm373 = vcmp.eq.s32.totalorder %v33, %v315
  %vm374 = vcmp.eq.s32.totalorder %v33, %v318
  %vm375 = vcmp.eq.s32.totalorder %v33, %v321
  %vm376 = vcmp.eq.s32.totalorder %v33, %v324
  %vm377 = vcmp.eq.s32.totalorder %v33, %v327
  %vm378 = vcmp.eq.s32.totalorder %v33, %v330
  %vm379 = vcmp.eq.s32.totalorder %v33, %v333
  %vm380 = vcmp.eq.s32.totalorder %v33, %v336
  %vm381 = vcmp.eq.s32.totalorder %v33, %v339
  %vm382 = vcmp.eq.s32.totalorder %v33, %v342
  %vm383 = vcmp.eq.s32.totalorder %v33, %v345
  %vm384 = vcmp.eq.s32.totalorder %v33, %v348
  %vm385 = vcmp.eq.s32.totalorder %v33, %v351
  %vm386 = vcmp.eq.s32.totalorder %v33, %v354
  %vm387 = vmor %vm162, %vm355
  %vm388 = vmor %vm163, %vm356
  %vm389 = vmor %vm164, %vm357
  %vm390 = vmor %vm165, %vm358
  %vm391 = vmor %vm166, %vm359
  %vm392 = vmor %vm167, %vm360
  %vm393 = vmor %vm168, %vm361
  %vm394 = vmor %vm169, %vm362
  %vm395 = vmor %vm170, %vm363
  %vm396 = vmor %vm171, %vm364
  %vm397 = vmor %vm172, %vm365
  %vm398 = vmor %vm173, %vm366
  %vm399 = vmor %vm174, %vm367
  %vm400 = vmor %vm175, %vm368
  %vm401 = vmor %vm176, %vm369
  %vm402 = vmor %vm177, %vm370
  %vm403 = vmor %vm178, %vm371
  %vm404 = vmor %vm179, %vm372
  %vm405 = vmor %vm180, %vm373
  %vm406 = vmor %vm181, %vm374
  %vm407 = vmor %vm182, %vm375
  %vm408 = vmor %vm183, %vm376
  %vm409 = vmor %vm184, %vm377
  %vm410 = vmor %vm185, %vm378
  %vm411 = vmor %vm186, %vm379
  %vm412 = vmor %vm187, %vm380
  %vm413 = vmor %vm188, %vm381
  %vm414 = vmor %vm189, %vm382
  %vm415 = vmor %vm190, %vm383
  %vm416 = vmor %vm191, %vm384
  %vm417 = vmor %vm192, %vm385
  %vm418 = vmor %vm193, %vm386
  %s419 = scalar_lea.vmem %s0, 512
  %v420 = vld [vmem:[%s419] sm:$0xff]
  %v421 = vld [vmem:[%s419 + $0x8] sm:$0xff]
  %v422 = vld [vmem:[%s419 + $0x10] sm:$0xff]
  %v423 = vld [vmem:[%s419 + $0x18] sm:$0xff]
  %v424 = vld [vmem:[%s419 + $0x20] sm:$0xff]
  %v425 = vld [vmem:[%s419 + $0x28] sm:$0xff]
  %v426 = vld [vmem:[%s419 + $0x30] sm:$0xff]
  %v427 = vld [vmem:[%s419 + $0x38] sm:$0xff]
  %v428 = vld [vmem:[%s419 + $0x40] sm:$0xff]
  %v429 = vld [vmem:[%s419 + $0x48] sm:$0xff]
  %v430 = vld [vmem:[%s419 + $0x50] sm:$0xff]
  %v431 = vld [vmem:[%s419 + $0x58] sm:$0xff]
  %v432 = vld [vmem:[%s419 + $0x60] sm:$0xff]
  %v433 = vld [vmem:[%s419 + $0x68] sm:$0xff]
  %v434 = vld [vmem:[%s419 + $0x70] sm:$0xff]
  %v435 = vld [vmem:[%s419 + $0x78] sm:$0xff]
  %v436 = vld [vmem:[%s419 + $0x80] sm:$0xff]
  %v437 = vld [vmem:[%s419 + $0x88] sm:$0xff]
  %v438 = vld [vmem:[%s419 + $0x90] sm:$0xff]
  %v439 = vld [vmem:[%s419 + $0x98] sm:$0xff]
  %v440 = vld [vmem:[%s419 + $0xa0] sm:$0xff]
  %v441 = vld [vmem:[%s419 + $0xa8] sm:$0xff]
  %v442 = vld [vmem:[%s419 + $0xb0] sm:$0xff]
  %v443 = vld [vmem:[%s419 + $0xb8] sm:$0xff]
  %v444 = vld [vmem:[%s419 + $0xc0] sm:$0xff]
  %v445 = vld [vmem:[%s419 + $0xc8] sm:$0xff]
  %v446 = vld [vmem:[%s419 + $0xd0] sm:$0xff]
  %v447 = vld [vmem:[%s419 + $0xd8] sm:$0xff]
  %v448 = vld [vmem:[%s419 + $0xe0] sm:$0xff]
  %v449 = vld [vmem:[%s419 + $0xe8] sm:$0xff]
  %v450 = vld [vmem:[%s419 + $0xf0] sm:$0xff]
  %v451 = vld [vmem:[%s419 + $0xf8] sm:$0xff]
  %v452 = vadd.s32 %v420, 64
  %v453 = vadd.s32 %v421, 64
  %v454 = vadd.s32 %v422, 64
  %v455 = vadd.s32 %v423, 64
  %v456 = vadd.s32 %v424, 64
  %v457 = vadd.s32 %v425, 64
  %v458 = vadd.s32 %v426, 64
  %v459 = vadd.s32 %v427, 64
  %v460 = vadd.s32 %v428, 64
  %v461 = vadd.s32 %v429, 64
  %v462 = vadd.s32 %v430, 64
  %v463 = vadd.s32 %v431, 64
  %v464 = vadd.s32 %v432, 64
  %v465 = vadd.s32 %v433, 64
  %v466 = vadd.s32 %v434, 64
  %v467 = vadd.s32 %v435, 64
  %v468 = vadd.s32 %v436, 64
  %v469 = vadd.s32 %v437, 64
  %v470 = vadd.s32 %v438, 64
  %v471 = vadd.s32 %v439, 64
  %v472 = vadd.s32 %v440, 64
  %v473 = vadd.s32 %v441, 64
  %v474 = vadd.s32 %v442, 64
  %v475 = vadd.s32 %v443, 64
  %v476 = vadd.s32 %v444, 64
  %v477 = vadd.s32 %v445, 64
  %v478 = vadd.s32 %v446, 64
  %v479 = vadd.s32 %v447, 64
  %v480 = vadd.s32 %v448, 64
  %v481 = vadd.s32 %v449, 64
  %v482 = vadd.s32 %v450, 64
  %v483 = vadd.s32 %v451, 64
  %484 = vset.pattern.permute.xlu0 0
  %485 = vperm.xlu0 %484, %v452
  %v486 = vpop.permute.xlu0 %485
  %487 = vset.pattern.permute.xlu0 0
  %488 = vperm.xlu0 %487, %v453
  %v489 = vpop.permute.xlu0 %488
  %490 = vset.pattern.permute.xlu0 0
  %491 = vperm.xlu0 %490, %v454
  %v492 = vpop.permute.xlu0 %491
  %493 = vset.pattern.permute.xlu0 0
  %494 = vperm.xlu0 %493, %v455
  %v495 = vpop.permute.xlu0 %494
  %496 = vset.pattern.permute.xlu0 0
  %497 = vperm.xlu0 %496, %v456
  %v498 = vpop.permute.xlu0 %497
  %499 = vset.pattern.permute.xlu0 0
  %500 = vperm.xlu0 %499, %v457
  %v501 = vpop.permute.xlu0 %500
  %502 = vset.pattern.permute.xlu0 0
  %503 = vperm.xlu0 %502, %v458
  %v504 = vpop.permute.xlu0 %503
  %505 = vset.pattern.permute.xlu0 0
  %506 = vperm.xlu0 %505, %v459
  %v507 = vpop.permute.xlu0 %506
  %508 = vset.pattern.permute.xlu0 0
  %509 = vperm.xlu0 %508, %v460
  %v510 = vpop.permute.xlu0 %509
  %511 = vset.pattern.permute.xlu0 0
  %512 = vperm.xlu0 %511, %v461
  %v513 = vpop.permute.xlu0 %512
  %514 = vset.pattern.permute.xlu0 0
  %515 = vperm.xlu0 %514, %v462
  %v516 = vpop.permute.xlu0 %515
  %517 = vset.pattern.permute.xlu0 0
  %518 = vperm.xlu0 %517, %v463
  %v519 = vpop.permute.xlu0 %518
  %520 = vset.pattern.permute.xlu0 0
  %521 = vperm.xlu0 %520, %v464
  %v522 = vpop.permute.xlu0 %521
  %523 = vset.pattern.permute.xlu0 0
  %524 = vperm.xlu0 %523, %v465
  %v525 = vpop.permute.xlu0 %524
  %526 = vset.pattern.permute.xlu0 0
  %527 = vperm.xlu0 %526, %v466
  %v528 = vpop.permute.xlu0 %527
  %529 = vset.pattern.permute.xlu0 0
  %530 = vperm.xlu0 %529, %v467
  %v531 = vpop.permute.xlu0 %530
  %532 = vset.pattern.permute.xlu0 0
  %533 = vperm.xlu0 %532, %v468
  %v534 = vpop.permute.xlu0 %533
  %535 = vset.pattern.permute.xlu0 0
  %536 = vperm.xlu0 %535, %v469
  %v537 = vpop.permute.xlu0 %536
  %538 = vset.pattern.permute.xlu0 0
  %539 = vperm.xlu0 %538, %v470
  %v540 = vpop.permute.xlu0 %539
  %541 = vset.pattern.permute.xlu0 0
  %542 = vperm.xlu0 %541, %v471
  %v543 = vpop.permute.xlu0 %542
  %544 = vset.pattern.permute.xlu0 0
  %545 = vperm.xlu0 %544, %v472
  %v546 = vpop.permute.xlu0 %545
  %547 = vset.pattern.permute.xlu0 0
  %548 = vperm.xlu0 %547, %v473
  %v549 = vpop.permute.xlu0 %548
  %550 = vset.pattern.permute.xlu0 0
  %551 = vperm.xlu0 %550, %v474
  %v552 = vpop.permute.xlu0 %551
  %553 = vset.pattern.permute.xlu0 0
  %554 = vperm.xlu0 %553, %v475
  %v555 = vpop.permute.xlu0 %554
  %556 = vset.pattern.permute.xlu0 0
  %557 = vperm.xlu0 %556, %v476
  %v558 = vpop.permute.xlu0 %557
  %559 = vset.pattern.permute.xlu0 0
  %560 = vperm.xlu0 %559, %v477
  %v561 = vpop.permute.xlu0 %560
  %562 = vset.pattern.permute.xlu0 0
  %563 = vperm.xlu0 %562, %v478
  %v564 = vpop.permute.xlu0 %563
  %565 = vset.pattern.permute.xlu0 0
  %566 = vperm.xlu0 %565, %v479
  %v567 = vpop.permute.xlu0 %566
  %568 = vset.pattern.permute.xlu0 0
  %569 = vperm.xlu0 %568, %v480
  %v570 = vpop.permute.xlu0 %569
  %571 = vset.pattern.permute.xlu0 0
  %572 = vperm.xlu0 %571, %v481
  %v573 = vpop.permute.xlu0 %572
  %574 = vset.pattern.permute.xlu0 0
  %575 = vperm.xlu0 %574, %v482
  %v576 = vpop.permute.xlu0 %575
  %577 = vset.pattern.permute.xlu0 0
  %578 = vperm.xlu0 %577, %v483
  %v579 = vpop.permute.xlu0 %578
  %vm580 = vcmp.eq.s32.totalorder %v33, %v486
  %vm581 = vcmp.eq.s32.totalorder %v33, %v489
  %vm582 = vcmp.eq.s32.totalorder %v33, %v492
  %vm583 = vcmp.eq.s32.totalorder %v33, %v495
  %vm584 = vcmp.eq.s32.totalorder %v33, %v498
  %vm585 = vcmp.eq.s32.totalorder %v33, %v501
  %vm586 = vcmp.eq.s32.totalorder %v33, %v504
  %vm587 = vcmp.eq.s32.totalorder %v33, %v507
  %vm588 = vcmp.eq.s32.totalorder %v33, %v510
  %vm589 = vcmp.eq.s32.totalorder %v33, %v513
  %vm590 = vcmp.eq.s32.totalorder %v33, %v516
  %vm591 = vcmp.eq.s32.totalorder %v33, %v519
  %vm592 = vcmp.eq.s32.totalorder %v33, %v522
  %vm593 = vcmp.eq.s32.totalorder %v33, %v525
  %vm594 = vcmp.eq.s32.totalorder %v33, %v528
  %vm595 = vcmp.eq.s32.totalorder %v33, %v531
  %vm596 = vcmp.eq.s32.totalorder %v33, %v534
  %vm597 = vcmp.eq.s32.totalorder %v33, %v537
  %vm598 = vcmp.eq.s32.totalorder %v33, %v540
  %vm599 = vcmp.eq.s32.totalorder %v33, %v543
  %vm600 = vcmp.eq.s32.totalorder %v33, %v546
  %vm601 = vcmp.eq.s32.totalorder %v33, %v549
  %vm602 = vcmp.eq.s32.totalorder %v33, %v552
  %vm603 = vcmp.eq.s32.totalorder %v33, %v555
  %vm604 = vcmp.eq.s32.totalorder %v33, %v558
  %vm605 = vcmp.eq.s32.totalorder %v33, %v561
  %vm606 = vcmp.eq.s32.totalorder %v33, %v564
  %vm607 = vcmp.eq.s32.totalorder %v33, %v567
  %vm608 = vcmp.eq.s32.totalorder %v33, %v570
  %vm609 = vcmp.eq.s32.totalorder %v33, %v573
  %vm610 = vcmp.eq.s32.totalorder %v33, %v576
  %vm611 = vcmp.eq.s32.totalorder %v33, %v579
  %vm612 = vmor %vm387, %vm580
  %vm613 = vmor %vm388, %vm581
  %vm614 = vmor %vm389, %vm582
  %vm615 = vmor %vm390, %vm583
  %vm616 = vmor %vm391, %vm584
  %vm617 = vmor %vm392, %vm585
  %vm618 = vmor %vm393, %vm586
  %vm619 = vmor %vm394, %vm587
  %vm620 = vmor %vm395, %vm588
  %vm621 = vmor %vm396, %vm589
  %vm622 = vmor %vm397, %vm590
  %vm623 = vmor %vm398, %vm591
  %vm624 = vmor %vm399, %vm592
  %vm625 = vmor %vm400, %vm593
  %vm626 = vmor %vm401, %vm594
  %vm627 = vmor %vm402, %vm595
  %vm628 = vmor %vm403, %vm596
  %vm629 = vmor %vm404, %vm597
  %vm630 = vmor %vm405, %vm598
  %vm631 = vmor %vm406, %vm599
  %vm632 = vmor %vm407, %vm600
  %vm633 = vmor %vm408, %vm601
  %vm634 = vmor %vm409, %vm602
  %vm635 = vmor %vm410, %vm603
  %vm636 = vmor %vm411, %vm604
  %vm637 = vmor %vm412, %vm605
  %vm638 = vmor %vm413, %vm606
  %vm639 = vmor %vm414, %vm607
  %vm640 = vmor %vm415, %vm608
  %vm641 = vmor %vm416, %vm609
  %vm642 = vmor %vm417, %vm610
  %vm643 = vmor %vm418, %vm611
  %v644 = vsel %vm612, 1.0, 0.0
  %v645 = vsel %vm613, 1.0, 0.0
  %v646 = vsel %vm614, 1.0, 0.0
  %v647 = vsel %vm615, 1.0, 0.0
  %v648 = vsel %vm616, 1.0, 0.0
  %v649 = vsel %vm617, 1.0, 0.0
  %v650 = vsel %vm618, 1.0, 0.0
  %v651 = vsel %vm619, 1.0, 0.0
  %v652 = vsel %vm620, 1.0, 0.0
  %v653 = vsel %vm621, 1.0, 0.0
  %v654 = vsel %vm622, 1.0, 0.0
  %v655 = vsel %vm623, 1.0, 0.0
  %v656 = vsel %vm624, 1.0, 0.0
  %v657 = vsel %vm625, 1.0, 0.0
  %v658 = vsel %vm626, 1.0, 0.0
  %v659 = vsel %vm627, 1.0, 0.0
  %v660 = vsel %vm628, 1.0, 0.0
  %v661 = vsel %vm629, 1.0, 0.0
  %v662 = vsel %vm630, 1.0, 0.0
  %v663 = vsel %vm631, 1.0, 0.0
  %v664 = vsel %vm632, 1.0, 0.0
  %v665 = vsel %vm633, 1.0, 0.0
  %v666 = vsel %vm634, 1.0, 0.0
  %v667 = vsel %vm635, 1.0, 0.0
  %v668 = vsel %vm636, 1.0, 0.0
  %v669 = vsel %vm637, 1.0, 0.0
  %v670 = vsel %vm638, 1.0, 0.0
  %v671 = vsel %vm639, 1.0, 0.0
  %v672 = vsel %vm640, 1.0, 0.0
  %v673 = vsel %vm641, 1.0, 0.0
  %v674 = vsel %vm642, 1.0, 0.0
  %v675 = vsel %vm643, 1.0, 0.0
  %v676 = vpack.c.bf16 %v645, %v644
  %v677 = vpack.c.bf16 %v647, %v646
  %v678 = vpack.c.bf16 %v649, %v648
  %v679 = vpack.c.bf16 %v651, %v650
  %v680 = vpack.c.bf16 %v653, %v652
  %v681 = vpack.c.bf16 %v655, %v654
  %v682 = vpack.c.bf16 %v657, %v656
  %v683 = vpack.c.bf16 %v659, %v658
  %v684 = vpack.c.bf16 %v661, %v660
  %v685 = vpack.c.bf16 %v663, %v662
  %v686 = vpack.c.bf16 %v665, %v664
  %v687 = vpack.c.bf16 %v667, %v666
  %v688 = vpack.c.bf16 %v669, %v668
  %v689 = vpack.c.bf16 %v671, %v670
  %v690 = vpack.c.bf16 %v673, %v672
  %v691 = vpack.c.bf16 %v675, %v674
  %v692 = vld [vmem:[%s2] sm:$0xf]
  %v693 = vld [vmem:[%s2 + $0x4] sm:$0xf]
  %v694 = vld [vmem:[%s2 + $0x8] sm:$0xf]
  %v695 = vld [vmem:[%s2 + $0xc] sm:$0xf]
  %v696 = vld [vmem:[%s2 + $0x10] sm:$0xf]
  %v697 = vld [vmem:[%s2 + $0x14] sm:$0xf]
  %v698 = vld [vmem:[%s2 + $0x18] sm:$0xf]
  %v699 = vld [vmem:[%s2 + $0x1c] sm:$0xf]
  %v700 = vld [vmem:[%s2 + $0x20] sm:$0xf]
  %v701 = vld [vmem:[%s2 + $0x24] sm:$0xf]
  %v702 = vld [vmem:[%s2 + $0x28] sm:$0xf]
  %v703 = vld [vmem:[%s2 + $0x2c] sm:$0xf]
  %v704 = vld [vmem:[%s3] sm:$0x1]
  %v706 = vperm.slane %v704, 0
  %v720 = vunpack.c.l.b16 %v692
  %v721 = vunpack.c.l.b16 %v693
  %v722 = vunpack.c.l.b16 %v694
  %v723 = vunpack.c.l.b16 %v695
  %v724 = vunpack.c.l.b16 %v696
  %v725 = vunpack.c.l.b16 %v697
  %v726 = vunpack.c.l.b16 %v698
  %v727 = vunpack.c.l.b16 %v699
  %v728 = vunpack.c.l.b16 %v700
  %v729 = vunpack.c.l.b16 %v701
  %v730 = vunpack.c.l.b16 %v702
  %v731 = vunpack.c.l.b16 %v703
  %v732 = vpack.c.b16 %v721, %v720
  %v733 = vpack.c.b16 %v723, %v722
  %v734 = vpack.c.b16 %v725, %v724
  %v735 = vpack.c.b16 %v727, %v726
  %v736 = vpack.c.b16 %v729, %v728
  %v737 = vpack.c.b16 %v731, %v730
  %vm744 = vcmask 785408
  %v746 = vsel %vm744, %v676, 0
  %v749 = vsel %vm744, %v677, 0
  %v752 = vsel %vm744, %v678, 0
  %v755 = vsel %vm744, %v679, 0
  %v758 = vsel %vm744, %v680, 0
  %v761 = vsel %vm744, %v681, 0
  %v764 = vsel %vm744, %v682, 0
  %v767 = vsel %vm744, %v683, 0
  %v770 = vsel %vm744, %v684, 0
  %v773 = vsel %vm744, %v685, 0
  %v776 = vsel %vm744, %v686, 0
  %v779 = vsel %vm744, %v687, 0
  %v782 = vsel %vm744, %v688, 0
  %v785 = vsel %vm744, %v689, 0
  %v788 = vsel %vm744, %v690, 0
  %v791 = vsel %vm744, %v691, 0
  %793 = vmatpush.bf16.msra.mxu0 0
  %794 = vmatpush.bf16.msra.mxu0 0
  %795 = vmatpush.bf16.msra.mxu0 %v737
  %796 = vmatpush.bf16.msra.mxu0 %v736
  %797 = vmatpush.bf16.msra.mxu0 %v735
  %798 = vmatpush.bf16.msra.mxu0 %v734
  %799 = vmatpush.bf16.msra.mxu0 %v733
  %800 = vmatpush.bf16.msra.mxu0 %v732
  %801 = vmatmul.bf16.gmra.mxu0 %v746
  %v802 = vpop.f32.mrf.mxu0
  %v803 = vadd.f32 %v706, %v802
  %v804 = vpop.f32.mrf.mxu0
  %v805 = vadd.f32 %v706, %v804
  %806 = vmatmul.bf16.gmra.mxu0 %v749
  %v807 = vpop.f32.mrf.mxu0
  %v808 = vadd.f32 %v706, %v807
  %v809 = vpop.f32.mrf.mxu0
  %v810 = vadd.f32 %v706, %v809
  %811 = vmatmul.bf16.gmra.mxu0 %v752
  %v812 = vpop.f32.mrf.mxu0
  %v813 = vadd.f32 %v706, %v812
  %v814 = vpop.f32.mrf.mxu0
  %v815 = vadd.f32 %v706, %v814
  %816 = vmatmul.bf16.gmra.mxu0 %v755
  %v817 = vpop.f32.mrf.mxu0
  %v818 = vadd.f32 %v706, %v817
  %v819 = vpop.f32.mrf.mxu0
  %v820 = vadd.f32 %v706, %v819
  %821 = vmatmul.bf16.gmra.mxu0 %v758
  %v822 = vpop.f32.mrf.mxu0
  %v823 = vadd.f32 %v706, %v822
  %v824 = vpop.f32.mrf.mxu0
  %v825 = vadd.f32 %v706, %v824
  %826 = vmatmul.bf16.gmra.mxu0 %v761
  %v827 = vpop.f32.mrf.mxu0
  %v828 = vadd.f32 %v706, %v827
  %v829 = vpop.f32.mrf.mxu0
  %v830 = vadd.f32 %v706, %v829
  %831 = vmatmul.bf16.gmra.mxu0 %v764
  %v832 = vpop.f32.mrf.mxu0
  %v833 = vadd.f32 %v706, %v832
  %v834 = vpop.f32.mrf.mxu0
  %v835 = vadd.f32 %v706, %v834
  %836 = vmatmul.bf16.gmra.mxu0 %v767
  %v837 = vpop.f32.mrf.mxu0
  %v838 = vadd.f32 %v706, %v837
  %v839 = vpop.f32.mrf.mxu0
  %v840 = vadd.f32 %v706, %v839
  %841 = vmatmul.bf16.gmra.mxu0 %v770
  %v842 = vpop.f32.mrf.mxu0
  %v843 = vadd.f32 %v706, %v842
  %v844 = vpop.f32.mrf.mxu0
  %v845 = vadd.f32 %v706, %v844
  %846 = vmatmul.bf16.gmra.mxu0 %v773
  %v847 = vpop.f32.mrf.mxu0
  %v848 = vadd.f32 %v706, %v847
  %v849 = vpop.f32.mrf.mxu0
  %v850 = vadd.f32 %v706, %v849
  %851 = vmatmul.bf16.gmra.mxu0 %v776
  %v852 = vpop.f32.mrf.mxu0
  %v853 = vadd.f32 %v706, %v852
  %v854 = vpop.f32.mrf.mxu0
  %v855 = vadd.f32 %v706, %v854
  %856 = vmatmul.bf16.gmra.mxu0 %v779
  %v857 = vpop.f32.mrf.mxu0
  %v858 = vadd.f32 %v706, %v857
  %v859 = vpop.f32.mrf.mxu0
  %v860 = vadd.f32 %v706, %v859
  %861 = vmatmul.bf16.gmra.mxu0 %v782
  %v862 = vpop.f32.mrf.mxu0
  %v863 = vadd.f32 %v706, %v862
  %v864 = vpop.f32.mrf.mxu0
  %v865 = vadd.f32 %v706, %v864
  %866 = vmatmul.bf16.gmra.mxu0 %v785
  %v867 = vpop.f32.mrf.mxu0
  %v868 = vadd.f32 %v706, %v867
  %v869 = vpop.f32.mrf.mxu0
  %v870 = vadd.f32 %v706, %v869
  %871 = vmatmul.bf16.gmra.mxu0 %v788
  %v872 = vpop.f32.mrf.mxu0
  %v873 = vadd.f32 %v706, %v872
  %v874 = vpop.f32.mrf.mxu0
  %v875 = vadd.f32 %v706, %v874
  %876 = vmatmul.bf16.gmra.mxu0 %v791
  %v877 = vpop.f32.mrf.mxu0
  %v878 = vadd.f32 %v706, %v877
  %v879 = vpop.f32.mrf.mxu0
  %v880 = vadd.f32 %v706, %v879
  %881 = vdwg.mxu0
  %v882 = vtanh.pop %v803
  %v883 = vtanh.pop %v805
  %v884 = vtanh.pop %v808
  %v885 = vtanh.pop %v810
  %v886 = vtanh.pop %v813
  %v887 = vtanh.pop %v815
  %v888 = vtanh.pop %v818
  %v889 = vtanh.pop %v820
  %v890 = vtanh.pop %v823
  %v891 = vtanh.pop %v825
  %v892 = vtanh.pop %v828
  %v893 = vtanh.pop %v830
  %v894 = vtanh.pop %v833
  %v895 = vtanh.pop %v835
  %v896 = vtanh.pop %v838
  %v897 = vtanh.pop %v840
  %v898 = vtanh.pop %v843
  %v899 = vtanh.pop %v845
  %v900 = vtanh.pop %v848
  %v901 = vtanh.pop %v850
  %v902 = vtanh.pop %v853
  %v903 = vtanh.pop %v855
  %v904 = vtanh.pop %v858
  %v905 = vtanh.pop %v860
  %v906 = vtanh.pop %v863
  %v907 = vtanh.pop %v865
  %v908 = vtanh.pop %v868
  %v909 = vtanh.pop %v870
  %v910 = vtanh.pop %v873
  %v911 = vtanh.pop %v875
  %v912 = vtanh.pop %v878
  %v913 = vtanh.pop %v880
  %v914 = vpack.c.bf16 %v883, %v882
  %v915 = vpack.c.bf16 %v885, %v884
  %v916 = vpack.c.bf16 %v887, %v886
  %v917 = vpack.c.bf16 %v889, %v888
  %v918 = vpack.c.bf16 %v891, %v890
  %v919 = vpack.c.bf16 %v893, %v892
  %v920 = vpack.c.bf16 %v895, %v894
  %v921 = vpack.c.bf16 %v897, %v896
  %v922 = vpack.c.bf16 %v899, %v898
  %v923 = vpack.c.bf16 %v901, %v900
  %v924 = vpack.c.bf16 %v903, %v902
  %v925 = vpack.c.bf16 %v905, %v904
  %v926 = vpack.c.bf16 %v907, %v906
  %v927 = vpack.c.bf16 %v909, %v908
  %v928 = vpack.c.bf16 %v911, %v910
  %v929 = vpack.c.bf16 %v913, %v912
  %v930 = vld [vmem:[%s1] sm:$0xff]
  %v931 = vld [vmem:[%s1 + $0x8] sm:$0xff]
  %932 = vset.pattern.permute.xlu0 0
  %933 = vperm.xlu0 %932, %v930
  %v934 = vpop.permute.xlu0 %933
  %935 = vset.pattern.permute.xlu0 0
  %936 = vperm.xlu0 %935, %v931
  %v937 = vpop.permute.xlu0 %936
  %vm938 = vcmp.eq.s32.totalorder %v33, %v934
  %vm939 = vcmp.eq.s32.totalorder %v33, %v937
  %s940 = scalar_lea.vmem %s1, 16
  %v941 = vld [vmem:[%s940] sm:$0xff]
  %v942 = vld [vmem:[%s940 + $0x8] sm:$0xff]
  %v943 = vadd.s32 %v941, 32
  %v944 = vadd.s32 %v942, 32
  %945 = vset.pattern.permute.xlu0 0
  %946 = vperm.xlu0 %945, %v943
  %v947 = vpop.permute.xlu0 %946
  %948 = vset.pattern.permute.xlu0 0
  %949 = vperm.xlu0 %948, %v944
  %v950 = vpop.permute.xlu0 %949
  %vm951 = vcmp.eq.s32.totalorder %v33, %v947
  %vm952 = vcmp.eq.s32.totalorder %v33, %v950
  %vm953 = vmor %vm938, %vm951
  %vm954 = vmor %vm939, %vm952
  %s955 = scalar_lea.vmem %s1, 32
  %v956 = vld [vmem:[%s955] sm:$0xff]
  %v957 = vld [vmem:[%s955 + $0x8] sm:$0xff]
  %v958 = vadd.s32 %v956, 64
  %v959 = vadd.s32 %v957, 64
  %960 = vset.pattern.permute.xlu0 0
  %961 = vperm.xlu0 %960, %v958
  %v962 = vpop.permute.xlu0 %961
  %963 = vset.pattern.permute.xlu0 0
  %964 = vperm.xlu0 %963, %v959
  %v965 = vpop.permute.xlu0 %964
  %vm966 = vcmp.eq.s32.totalorder %v33, %v962
  %vm967 = vcmp.eq.s32.totalorder %v33, %v965
  %vm968 = vmor %vm953, %vm966
  %vm969 = vmor %vm954, %vm967
  %v970 = vsel %vm968, 1.0, 0.0
  %v971 = vsel %vm969, 1.0, 0.0
  %v972 = vpack.c.bf16 %v971, %v970
  %v973 = vld [vmem:[%s4] sm:$0xf]
  %v974 = vld [vmem:[%s4 + $0x4] sm:$0xf]
  %v975 = vld [vmem:[%s4 + $0x8] sm:$0xf]
  %v976 = vld [vmem:[%s4 + $0xc] sm:$0xf]
  %v977 = vld [vmem:[%s4 + $0x10] sm:$0xf]
  %v978 = vld [vmem:[%s4 + $0x14] sm:$0xf]
  %v979 = vld [vmem:[%s4 + $0x18] sm:$0xf]
  %v980 = vld [vmem:[%s4 + $0x1c] sm:$0xf]
  %v981 = vld [vmem:[%s4 + $0x20] sm:$0xf]
  %v982 = vld [vmem:[%s4 + $0x24] sm:$0xf]
  %v983 = vld [vmem:[%s4 + $0x28] sm:$0xf]
  %v984 = vld [vmem:[%s4 + $0x2c] sm:$0xf]
  %v985 = vld [vmem:[%s5] sm:$0x1]
  %v987 = vperm.slane %v985, 0
  %v1001 = vunpack.c.l.b16 %v973
  %v1002 = vunpack.c.l.b16 %v974
  %v1003 = vunpack.c.l.b16 %v975
  %v1004 = vunpack.c.l.b16 %v976
  %v1005 = vunpack.c.l.b16 %v977
  %v1006 = vunpack.c.l.b16 %v978
  %v1007 = vunpack.c.l.b16 %v979
  %v1008 = vunpack.c.l.b16 %v980
  %v1009 = vunpack.c.l.b16 %v981
  %v1010 = vunpack.c.l.b16 %v982
  %v1011 = vunpack.c.l.b16 %v983
  %v1012 = vunpack.c.l.b16 %v984
  %v1013 = vpack.c.b16 %v1002, %v1001
  %v1014 = vpack.c.b16 %v1004, %v1003
  %v1015 = vpack.c.b16 %v1006, %v1005
  %v1016 = vpack.c.b16 %v1008, %v1007
  %v1017 = vpack.c.b16 %v1010, %v1009
  %v1018 = vpack.c.b16 %v1012, %v1011
  %v1026 = vsel %vm744, %v972, 0
  %1028 = vmatpush.bf16.msra.mxu0 0
  %1029 = vmatpush.bf16.msra.mxu0 0
  %1030 = vmatpush.bf16.msra.mxu0 %v1018
  %1031 = vmatpush.bf16.msra.mxu0 %v1017
  %1032 = vmatpush.bf16.msra.mxu0 %v1016
  %1033 = vmatpush.bf16.msra.mxu0 %v1015
  %1034 = vmatpush.bf16.msra.mxu0 %v1014
  %1035 = vmatpush.bf16.msra.mxu0 %v1013
  %1036 = vmatmul.bf16.gmra.mxu0 %v1026
  %v1037 = vpop.f32.mrf.mxu0
  %v1038 = vadd.f32 %v987, %v1037
  %v1039 = vpop.f32.mrf.mxu0
  %v1040 = vadd.f32 %v987, %v1039
  %1041 = vdwg.mxu0
  %v1042 = vtanh.pop %v1038
  %v1043 = vtanh.pop %v1040
  %v1044 = vpack.c.bf16 %v1043, %v1042
  %vm1045 = vcmask 261120
  %v1047 = vsel %vm1045, %v1044, 0
  %v1050 = vsel %vm1045, %v914, 0
  %v1053 = vsel %vm1045, %v915, 0
  %v1056 = vsel %vm1045, %v916, 0
  %v1059 = vsel %vm1045, %v917, 0
  %v1062 = vsel %vm1045, %v918, 0
  %v1065 = vsel %vm1045, %v919, 0
  %v1068 = vsel %vm1045, %v920, 0
  %v1071 = vsel %vm1045, %v921, 0
  %v1074 = vsel %vm1045, %v922, 0
  %v1077 = vsel %vm1045, %v923, 0
  %v1080 = vsel %vm1045, %v924, 0
  %v1083 = vsel %vm1045, %v925, 0
  %v1086 = vsel %vm1045, %v926, 0
  %v1089 = vsel %vm1045, %v927, 0
  %v1092 = vsel %vm1045, %v928, 0
  %v1095 = vsel %vm1045, %v929, 0
  %1097 = vmatpush.bf16.xpose.msra.mxu0 %v1071
  %1098 = vmatpush.bf16.xpose.msra.mxu0 %v1068
  %1099 = vmatpush.bf16.xpose.msra.mxu0 %v1065
  %1100 = vmatpush.bf16.xpose.msra.mxu0 %v1062
  %1101 = vmatpush.bf16.xpose.msra.mxu0 %v1059
  %1102 = vmatpush.bf16.xpose.msra.mxu0 %v1056
  %1103 = vmatpush.bf16.xpose.msra.mxu0 %v1053
  %1104 = vmatpush.bf16.xpose.msra.mxu0 %v1050
  %1105 = vmatmul.bf16.gmra.mxu0 %v1047
  %v1106 = vpop.f32.mrf.mxu0
  %v1107 = vadd.f32 0.0, %v1106
  %v1108 = vpop.f32.mrf.mxu0
  %v1109 = vadd.f32 0.0, %v1108
  %1110 = vdwg.mxu0
  %1111 = vmatpush.bf16.xpose.msra.mxu0 %v1095
  %1112 = vmatpush.bf16.xpose.msra.mxu0 %v1092
  %1113 = vmatpush.bf16.xpose.msra.mxu0 %v1089
  %1114 = vmatpush.bf16.xpose.msra.mxu0 %v1086
  %1115 = vmatpush.bf16.xpose.msra.mxu0 %v1083
  %1116 = vmatpush.bf16.xpose.msra.mxu0 %v1080
  %1117 = vmatpush.bf16.xpose.msra.mxu0 %v1077
  %1118 = vmatpush.bf16.xpose.msra.mxu0 %v1074
  %1119 = vmatmul.bf16.gmra.mxu0 %v1047
  %v1120 = vpop.f32.mrf.mxu0
  %v1121 = vadd.f32 0.0, %v1120
  %v1122 = vpop.f32.mrf.mxu0
  %v1123 = vadd.f32 0.0, %v1122
  %1124 = vdwg.mxu0
  %v1125 = vlaneseq
  %v1126 = vshrl.u32 %v1125, 7
  %v1127 = vadd.s32 %v1126, 8
  %v1128 = vadd.s32 %v33, 128
  %vm1129 = vcmp.ge.s32.totalorder %v1126, 8
  %vm1130 = vcmp.ge.s32.totalorder %v1127, 8
  %v1131 = vsel %vm1129, 1, 0
  %v1132 = vsel %vm1130, 1, 0
  %v1133 = vmul.u32 %v1131, 128
  %v1134 = vmul.u32 %v1132, 128
  %v1135 = vsub.s32 %v33, %v1133
  %v1136 = vsub.s32 %v1128, %v1133
  %v1137 = vsub.s32 %v33, %v1134
  %v1138 = vsub.s32 %v1128, %v1134
  %vm1139 = vcmp.ge.s32.totalorder %v1135, 0
  %vm1140 = vcmp.ge.s32.totalorder %v1136, 0
  %vm1141 = vcmp.ge.s32.totalorder %v1137, 0
  %vm1142 = vcmp.ge.s32.totalorder %v1138, 0
  %vm1143 = vcmp.lt.s32.totalorder %v1135, 104
  %vm1144 = vcmp.lt.s32.totalorder %v1136, 104
  %vm1145 = vcmp.lt.s32.totalorder %v1137, 104
  %vm1146 = vcmp.lt.s32.totalorder %v1138, 104
  %vm1147 = vmand %vm1139, %vm1143
  %vm1148 = vmand %vm1140, %vm1144
  %vm1149 = vmand %vm1141, %vm1145
  %vm1150 = vmand %vm1142, %vm1146
  %vm1151 = vcmp.ge.s32.totalorder %v1135, 104
  %vm1152 = vcmp.ge.s32.totalorder %v1136, 104
  %vm1153 = vcmp.ge.s32.totalorder %v1137, 104
  %vm1154 = vcmp.ge.s32.totalorder %v1138, 104
  %vm1155 = vcmp.lt.s32.totalorder %v1135, 120
  %vm1156 = vcmp.lt.s32.totalorder %v1136, 120
  %vm1157 = vcmp.lt.s32.totalorder %v1137, 120
  %vm1158 = vcmp.lt.s32.totalorder %v1138, 120
  %vm1159 = vmand %vm1151, %vm1155
  %vm1160 = vmand %vm1152, %vm1156
  %vm1161 = vmand %vm1153, %vm1157
  %vm1162 = vmand %vm1154, %vm1158
  %v1163 = vsel %vm1147, %v1107, -1e+30
  %v1164 = vsel %vm1148, %v1121, -1e+30
  %v1165 = vsel %vm1149, %v1109, -1e+30
  %v1166 = vsel %vm1150, %v1123, -1e+30
  %v1167 = vmax.f32 %v1163, %v1164
  %1168 = vmax.xlane.f32.xlu0 %v1167
  %v1169 = vpop.xlane.xlu0 %1168
  %v1170 = vmax.f32 %v1165, %v1166
  %1171 = vmax.xlane.f32.xlu0 %v1170
  %v1172 = vpop.xlane.xlu0 %1171
  %v1173 = vsel %vm1159, %v1107, -1e+30
  %v1174 = vsel %vm1160, %v1121, -1e+30
  %v1175 = vsel %vm1161, %v1109, -1e+30
  %v1176 = vsel %vm1162, %v1123, -1e+30
  %v1177 = vmax.f32 %v1173, %v1174
  %1178 = vmax.xlane.f32.xlu0 %v1177
  %v1179 = vpop.xlane.xlu0 %1178
  %v1180 = vmax.f32 %v1175, %v1176
  %1181 = vmax.xlane.f32.xlu0 %v1180
  %v1182 = vpop.xlane.xlu0 %1181
  %v1183 = vsub.f32 %v1107, %v1169
  %v1184 = vsub.f32 %v1121, %v1169
  %v1185 = vsub.f32 %v1109, %v1172
  %v1186 = vsub.f32 %v1123, %v1172
  %v1187 = vsub.f32 %v1107, %v1179
  %v1188 = vsub.f32 %v1121, %v1179
  %v1189 = vsub.f32 %v1109, %v1182
  %v1190 = vsub.f32 %v1123, %v1182
  %v1191 = vsel %vm1159, %v1187, -1e+30
  %v1192 = vsel %vm1160, %v1188, -1e+30
  %v1193 = vsel %vm1161, %v1189, -1e+30
  %v1194 = vsel %vm1162, %v1190, -1e+30
  %v1195 = vsel %vm1147, %v1183, %v1191
  %v1196 = vsel %vm1148, %v1184, %v1192
  %v1197 = vsel %vm1149, %v1185, %v1193
  %v1198 = vsel %vm1150, %v1186, %v1194
  %v1199 = vmul.f32 %v1195, 1.442695
  %v1200 = vpow.pop %v1199
  %v1201 = vmul.f32 %v1196, 1.442695
  %v1202 = vpow.pop %v1201
  %v1203 = vmul.f32 %v1197, 1.442695
  %v1204 = vpow.pop %v1203
  %v1205 = vmul.f32 %v1198, 1.442695
  %v1206 = vpow.pop %v1205
  %v1207 = vsel %vm1147, %v1200, 0.0
  %v1208 = vsel %vm1148, %v1202, 0.0
  %v1209 = vsel %vm1149, %v1204, 0.0
  %v1210 = vsel %vm1150, %v1206, 0.0
  %v1211 = vadd.f32 %v1207, %v1208
  %1212 = vadd.xlane.f32.xlu0 %v1211
  %v1213 = vpop.xlane.xlu0 %1212
  %v1214 = vadd.f32 %v1209, %v1210
  %1215 = vadd.xlane.f32.xlu0 %v1214
  %v1216 = vpop.xlane.xlu0 %1215
  %v1217 = vsel %vm1159, %v1200, 0.0
  %v1218 = vsel %vm1160, %v1202, 0.0
  %v1219 = vsel %vm1161, %v1204, 0.0
  %v1220 = vsel %vm1162, %v1206, 0.0
  %v1221 = vadd.f32 %v1217, %v1218
  %1222 = vadd.xlane.f32.xlu0 %v1221
  %v1223 = vpop.xlane.xlu0 %1222
  %v1224 = vadd.f32 %v1219, %v1220
  %1225 = vadd.xlane.f32.xlu0 %v1224
  %v1226 = vpop.xlane.xlu0 %1225
  %v1227 = vrcp.pop %v1213
  %v1228 = vrcp.pop %v1216
  %v1229 = vrcp.pop %v1223
  %v1230 = vrcp.pop %v1226
  %v1231 = vsel %vm1147, %v1227, %v1229
  %v1232 = vsel %vm1148, %v1227, %v1229
  %v1233 = vsel %vm1149, %v1228, %v1230
  %v1234 = vsel %vm1150, %v1228, %v1230
  %v1235 = vmul.f32 %v1200, %v1231
  %v1236 = vmul.f32 %v1202, %v1232
  %v1237 = vmul.f32 %v1204, %v1233
  %v1238 = vmul.f32 %v1206, %v1234
  %v1239 = vpack.c.bf16 %v1237, %v1235
  %v1240 = vpack.c.bf16 %v1238, %v1236
  %1241 = vmatpush.bf16.msra.mxu0 %v921
  %1242 = vmatpush.bf16.msra.mxu0 %v920
  %1243 = vmatpush.bf16.msra.mxu0 %v919
  %1244 = vmatpush.bf16.msra.mxu0 %v918
  %1245 = vmatpush.bf16.msra.mxu0 %v917
  %1246 = vmatpush.bf16.msra.mxu0 %v916
  %1247 = vmatpush.bf16.msra.mxu0 %v915
  %1248 = vmatpush.bf16.msra.mxu0 %v914
  %1249 = vmatmul.bf16.gmra.mxu0 %v1239
  %v1250 = vpop.f32.mrf.mxu0
  %v1251 = vadd.f32 0.0, %v1250
  %v1252 = vpop.f32.mrf.mxu0
  %v1253 = vadd.f32 0.0, %v1252
  %1254 = vdwg.mxu0
  %1255 = vmatpush.bf16.msra.mxu0 %v929
  %1256 = vmatpush.bf16.msra.mxu0 %v928
  %1257 = vmatpush.bf16.msra.mxu0 %v927
  %1258 = vmatpush.bf16.msra.mxu0 %v926
  %1259 = vmatpush.bf16.msra.mxu0 %v925
  %1260 = vmatpush.bf16.msra.mxu0 %v924
  %1261 = vmatpush.bf16.msra.mxu0 %v923
  %1262 = vmatpush.bf16.msra.mxu0 %v922
  %1263 = vmatmul.bf16.gmra.mxu0 %v1240
  %v1264 = vpop.f32.mrf.mxu0
  %v1265 = vadd.f32 %v1251, %v1264
  %v1266 = vpop.f32.mrf.mxu0
  %v1267 = vadd.f32 %v1253, %v1266
  %1268 = vdwg.mxu0
  %v1269 = vadd.f32 %v1042, %v1265
  %v1270 = vadd.f32 %v1043, %v1267
  %v1271 = vpack.c.bf16 %v1270, %v1269
  %v1272 = vld [vmem:[%s6] sm:$0xf]
  %v1273 = vld [vmem:[%s6 + $0x4] sm:$0xf]
  %v1274 = vld [vmem:[%s6 + $0x8] sm:$0xf]
  %v1275 = vld [vmem:[%s6 + $0xc] sm:$0xf]
  %v1276 = vld [vmem:[%s7] sm:$0x1]
  %v1278 = vperm.slane %v1276, 0
  %v1284 = vunpack.c.l.b16 %v1272
  %v1285 = vunpack.c.l.b16 %v1273
  %v1286 = vunpack.c.l.b16 %v1274
  %v1287 = vunpack.c.l.b16 %v1275
  %v1288 = vpack.c.b16 %v1285, %v1284
  %v1289 = vpack.c.b16 %v1287, %v1286
  %v1293 = vsel %vm1045, %v1271, 0
  %1295 = vmatpush.bf16.msra.mxu0 0
  %1296 = vmatpush.bf16.msra.mxu0 0
  %1297 = vmatpush.bf16.msra.mxu0 0
  %1298 = vmatpush.bf16.msra.mxu0 0
  %1299 = vmatpush.bf16.msra.mxu0 0
  %1300 = vmatpush.bf16.msra.mxu0 0
  %1301 = vmatpush.bf16.msra.mxu0 %v1289
  %1302 = vmatpush.bf16.msra.mxu0 %v1288
  %1303 = vmatmul.bf16.gmra.mxu0 %v1293
  %v1304 = vpop.f32.mrf.mxu0
  %v1305 = vadd.f32 %v1278, %v1304
  %v1306 = vpop.f32.mrf.mxu0
  %v1307 = vadd.f32 %v1278, %v1306
  %1308 = vdwg.mxu0
  %v1309 = vtanh.pop %v1305
  %v1310 = vtanh.pop %v1307
  %1311 = vst.msk [vmem:[%s8] sm:$0xff] %vm1045, %v1309
  %1312 = vst.msk [vmem:[%s8 + $0x8] sm:$0xff] %vm1045, %v1310
  %1313 = vst [vmem:[%s9] sm:$0xff] %v1235
  %s1314 = scalar_lea.vmem %s9, 8
  %1315 = vst [vmem:[%s1314] sm:$0xff] %v1238
  // Predicated region
  $region34: #{a_call__.1} parent=0 // pred_check
    _
  $region35: #{a_call__.1} parent=0 // pred_check_branch
    %1317 = sbr.rel (0) target = $region37
  $region36: #{a_call__.1} parent=0 // pred_region
    _
  $region37: #{a_call__.1} parent=0 // pred_fallthru
    _
  // Predicated region
  $region38: #{a_call__.1} parent=0 // pred_check
    _
  $region39: #{a_call__.1} parent=0 // pred_check_branch
    %1319 = sbr.rel (0) target = $region41
  $region40: #{a_call__.1} parent=0 // pred_region
    _
  $region41: #{a_call__.1} parent=0 // pred_fallthru
    _
  // Predicated region
  $region42: #{a_call__.1} parent=0 // pred_check
    _
  $region43: #{a_call__.1} parent=0 // pred_check_branch
    %1321 = sbr.rel (0) target = $region45
  $region44: #{a_call__.1} parent=0 // pred_region
    _
  $region45: #{a_call__.1} parent=0 // pred_fallthru
    _
  // Predicated region
  $region46: #{a_call__.1} parent=0 // pred_check
    _
  $region47: #{a_call__.1} parent=0 // pred_check_branch
    %1323 = sbr.rel (0) target = $region49
  $region48: #{a_call__.1} parent=0 // pred_region
    _
  $region49: #{a_call__.1} parent=0 // pred_fallthru
    _

</llo_original>
